<compile_context>
chip_gen: v6e
topology: v6e:2x2x1
jax: 0.10.0
libtpu: 0.0.40
codegen_flags: <defaults>
</compile_context>

<pallas_src>
import functools

import jax
import jax.numpy as jnp
from jax import lax
from jax.experimental import pallas as pl
from jax.experimental.pallas import tpu as pltpu

SUBLANE = 8


def _sigmoid(x):
    return 1.0 / (1.0 + jnp.exp(-x))


# ------------------------- fused LSTM-stack + FC kernel ------------------------

def _lstm_model_kernel(*refs, num_layers, T, Bp, H):
    """Fused multi-layer LSTM + FC head (wavefront-pipelined over layers).

    refs layout (inputs..., outputs..., scratch...):
      refs[0]                        : x rows   (T*Bp, D)  f32, rows [t*Bp:(t+1)*Bp] = timestep t
      refs[1+3l], refs[2+3l],
      refs[3+3l]   (l = 0..L-1)      : W_ih_l^T (D_in, 4H), W_hh_l^T (H, 4H), b_l (1, 4H)
      refs[1+3L], refs[2+3L]         : W_fc^T (H, O), b_fc (1, O)
      refs[3+3L]                     : out (Bp, O)
      refs[4+3L]                     : proj_sc (T*Bp, 4H) VMEM scratch (layer-0 input projection)
    """
    L = num_layers
    x_ref = refs[0]
    fc_w_ref = refs[1 + 3 * L]
    fc_b_ref = refs[2 + 3 * L]
    out_ref = refs[3 + 3 * L]
    proj_sc = refs[4 + 3 * L]

    # Weights loaded once; resident for the whole kernel.
    w_ih = [refs[1 + 3 * l][...] for l in range(L)]   # (D_in, 4H)
    w_hh = [refs[2 + 3 * l][...] for l in range(L)]   # (H, 4H)
    bias = [refs[3 + 3 * l][...] for l in range(L)]   # (1, 4H)

    # Layer-0 input projection hoisted out of the recurrence: one MXU matmul
    # covering all T timesteps, stored to VMEM (per-step slices are full
    # tile-aligned (8, 4H) blocks).
    proj_sc[...] = jnp.dot(x_ref[...], w_ih[0],
                           preferred_element_type=jnp.float32) + bias[0]

    h = [jnp.zeros((Bp, H), jnp.float32) for _ in range(L)]
    c = [jnp.zeros((Bp, H), jnp.float32) for _ in range(L)]

    def cell(gates, c_prev):
        # Full-width activations: 2 EUP pushes on the whole (Bp, 4H) vreg,
        # then lane-slice; one more tanh on c.  PyTorch gate order i, f, g, o.
        sig = _sigmoid(gates)
        tah = jnp.tanh(gates)
        i_g = sig[:, 0 * H:1 * H]
        f_g = sig[:, 1 * H:2 * H]
        o_g = sig[:, 3 * H:4 * H]
        g_g = tah[:, 2 * H:3 * H]
        c_new = f_g * c_prev + i_g * g_g
        h_new = o_g * jnp.tanh(c_new)
        return h_new, c_new

    # Wavefront schedule: at wave w, layer l processes timestep t = w - l, so
    # adjacent layers run one timestep apart and their small, latency-bound
    # MXU matmuls are mutually independent (they overlap in the MXU pipeline).
    # Layers are emitted in decreasing order so h[l-1] still holds timestep
    # (w - l) when layer l consumes it.
    for w in range(T + L - 1):
        for l in range(L - 1, -1, -1):
            t = w - l
            if t < 0 or t >= T:
                continue
            if l == 0:
                gates = (proj_sc[t * Bp:(t + 1) * Bp, :]
                         + jnp.dot(h[0], w_hh[0],
                                   preferred_element_type=jnp.float32))
            else:
                gates = (jnp.dot(h[l - 1], w_ih[l],
                                 preferred_element_type=jnp.float32)
                         + jnp.dot(h[l], w_hh[l],
                                   preferred_element_type=jnp.float32)
                         + bias[l])
            h[l], c[l] = cell(gates, c[l])

    # FC head on the last layer's final hidden state; single write to HBM.
    out_ref[...] = (
        jnp.dot(h[L - 1], fc_w_ref[...], preferred_element_type=jnp.float32)
        + fc_b_ref[...]
    ).astype(out_ref.dtype)


# --------------------------- Wrapper / param prep ------------------------------

def prepare_params(params):
    """One-time (outside jit) layout prep: transpose weights, fuse biases."""
    H = params["lstm"][0]["w_hh"].shape[1]           # w_hh is (4H, H)
    O = params["fc"]["w"].shape[0]
    prepped = []
    for lp in params["lstm"]:
        prepped.append(jnp.asarray(lp["w_ih"].T, jnp.float32))                       # (D_in, 4H)
        prepped.append(jnp.asarray(lp["w_hh"].T, jnp.float32))                       # (H, 4H)
        prepped.append(jnp.asarray((lp["b_ih"] + lp["b_hh"]).reshape(1, 4 * H),
                                   jnp.float32))                                     # (1, 4H)
    prepped.append(jnp.asarray(params["fc"]["w"].T, jnp.float32))                    # (H, O)
    prepped.append(jnp.asarray(params["fc"]["b"].reshape(1, O), jnp.float32))        # (1, O)
    return tuple(prepped)


@jax.jit
def lstm_model_forward(prepped_weights, x_btd):
    """x_btd: (B, T, D) batch_first like the PyTorch module. Returns (B, output_dim)."""
    num_layers = (len(prepped_weights) - 2) // 3
    H = prepped_weights[1].shape[0]
    O = prepped_weights[-2].shape[1]
    B, T, D = x_btd.shape

    # Pad batch up to the 8-sublane tile so every per-timestep row block is
    # tile-aligned inside the kernel (no masked partial stores / shuffles).
    Bp = max(SUBLANE, ((B + SUBLANE - 1) // SUBLANE) * SUBLANE)
    x_tbd = jnp.transpose(x_btd, (1, 0, 2)).astype(jnp.float32)        # (T, B, D)
    x_tbd = jnp.pad(x_tbd, ((0, 0), (0, Bp - B), (0, 0)))              # (T, Bp, D)
    x_rows = x_tbd.reshape(T * Bp, D)                                  # rows [t*Bp:(t+1)*Bp] = step t

    kernel = functools.partial(_lstm_model_kernel,
                               num_layers=num_layers, T=T, Bp=Bp, H=H)

    # No grid: inputs + weights (~100 KB f32) stay resident in VMEM for the
    # single invocation; only the (Bp, O) result goes back to HBM.
    out = pl.pallas_call(
        kernel,
        out_shape=jax.ShapeDtypeStruct((Bp, O), jnp.float32),
        scratch_shapes=[pltpu.VMEM((T * Bp, 4 * H), jnp.float32)],
    )(x_rows, *prepped_weights)
    return out[:B]


# ------------------------------ Parameter init ---------------------------------

def init_params(key, input_dim, hidden_dim, output_dim, num_layers):
    """Deterministic synthetic init mimicking PyTorch's uniform(-1/sqrt(H), 1/sqrt(H))."""
    params = {"lstm": [], "fc": {}}
    k = 1.0 / jnp.sqrt(jnp.float32(hidden_dim))
    for layer in range(num_layers):
        d_in = input_dim if layer == 0 else hidden_dim
        key, k1, k2, k3, k4 = jax.random.split(key, 5)
        params["lstm"].append({
            "w_ih": jax.random.uniform(k1, (4 * hidden_dim, d_in), jnp.float32, -k, k),
            "w_hh": jax.random.uniform(k2, (4 * hidden_dim, hidden_dim), jnp.float32, -k, k),
            "b_ih": jax.random.uniform(k3, (4 * hidden_dim,), jnp.float32, -k, k),
            "b_hh": jax.random.uniform(k4, (4 * hidden_dim,), jnp.float32, -k, k),
        })
    key, k1, k2 = jax.random.split(key, 3)
    params["fc"]["w"] = jax.random.uniform(k1, (output_dim, hidden_dim), jnp.float32, -k, k)
    params["fc"]["b"] = jax.random.uniform(k2, (output_dim,), jnp.float32, -k, k)
    return params


# ------------------------------ Pure-JAX reference ------------------------------

def _reference_forward(params, x_btd):
    x = jnp.transpose(x_btd, (1, 0, 2)).astype(jnp.float32)           # (T, B, D)
    for lp in params["lstm"]:
        H = lp["w_hh"].shape[1]
        w_ih_t, w_hh_t = lp["w_ih"].T, lp["w_hh"].T
        b = (lp["b_ih"] + lp["b_hh"])[None, :]

        def step(carry, x_t):
            h, c = carry
            g = x_t @ w_ih_t + h @ w_hh_t + b
            i = _sigmoid(g[:, 0 * H:1 * H])
            f = _sigmoid(g[:, 1 * H:2 * H])
            gg = jnp.tanh(g[:, 2 * H:3 * H])
            o = _sigmoid(g[:, 3 * H:4 * H])
            c = f * c + i * gg
            h = o * jnp.tanh(c)
            return (h, c), h

        B = x.shape[1]
        init = (jnp.zeros((B, H), jnp.float32), jnp.zeros((B, H), jnp.float32))
        _, x = lax.scan(step, init, x)
    last = x[-1]
    return last @ params["fc"]["w"].T + params["fc"]["b"][None, :]


# ----------------------------------- Main ---------------------------------------

if __name__ == "__main__":
    B, T = 2, 8
    input_dim, hidden_dim, output_dim, num_layers = 32, 32, 4, 2

    key = jax.random.PRNGKey(0)
    key, pkey, xkey = jax.random.split(key, 3)
    params = init_params(pkey, input_dim, hidden_dim, output_dim, num_layers)
    x = jax.random.normal(xkey, (B, T, input_dim), jnp.float32)

    prepped = prepare_params(params)            # one-time weight layout prep (outside jit)
    out = jax.block_until_ready(lstm_model_forward(prepped, x))

    ref = jax.block_until_ready(_reference_forward(params, x))
    assert out.shape == (B, output_dim)
    assert jnp.allclose(out, ref, atol=1e-4, rtol=1e-4), "mismatch vs pure-JAX reference"

    print("KERNEL_OK")
</pallas_src>

<mosaic_0001>
module attributes {stable_mosaic.version = 11 : i64} {
  func.func @_lstm_model_kernel(%arg0: memref<64x32xf32, #tpu.memory_space<vmem>>, %arg1: memref<32x128xf32, #tpu.memory_space<vmem>>, %arg2: memref<32x128xf32, #tpu.memory_space<vmem>>, %arg3: memref<1x128xf32, #tpu.memory_space<vmem>>, %arg4: memref<32x128xf32, #tpu.memory_space<vmem>>, %arg5: memref<32x128xf32, #tpu.memory_space<vmem>>, %arg6: memref<1x128xf32, #tpu.memory_space<vmem>>, %arg7: memref<32x4xf32, #tpu.memory_space<vmem>>, %arg8: memref<1x4xf32, #tpu.memory_space<vmem>>, %arg9: memref<8x4xf32, #tpu.memory_space<vmem>>, %arg10: memref<64x128xf32, #tpu.memory_space<vmem>>) attributes {dimension_semantics = [], scalar_prefetch = 0 : i64, scratch_operands = 1 : i64, tpu.core_type = #tpu.core_type<tc>} {
    %c0 = arith.constant 0 : index
    %c0_0 = arith.constant 0 : index
    %0 = vector.load %arg1[%c0, %c0_0] : memref<32x128xf32, #tpu.memory_space<vmem>>, vector<32x128xf32>
    %c0_1 = arith.constant 0 : index
    %c0_2 = arith.constant 0 : index
    %1 = vector.load %arg4[%c0_1, %c0_2] : memref<32x128xf32, #tpu.memory_space<vmem>>, vector<32x128xf32>
    %c0_3 = arith.constant 0 : index
    %c0_4 = arith.constant 0 : index
    %2 = vector.load %arg2[%c0_3, %c0_4] : memref<32x128xf32, #tpu.memory_space<vmem>>, vector<32x128xf32>
    %c0_5 = arith.constant 0 : index
    %c0_6 = arith.constant 0 : index
    %3 = vector.load %arg5[%c0_5, %c0_6] : memref<32x128xf32, #tpu.memory_space<vmem>>, vector<32x128xf32>
    %c0_7 = arith.constant 0 : index
    %c0_8 = arith.constant 0 : index
    %4 = vector.load %arg3[%c0_7, %c0_8] : memref<1x128xf32, #tpu.memory_space<vmem>>, vector<1x128xf32>
    %c0_9 = arith.constant 0 : index
    %c0_10 = arith.constant 0 : index
    %5 = vector.load %arg6[%c0_9, %c0_10] : memref<1x128xf32, #tpu.memory_space<vmem>>, vector<1x128xf32>
    %c0_11 = arith.constant 0 : index
    %c0_12 = arith.constant 0 : index
    %6 = vector.load %arg0[%c0_11, %c0_12] : memref<64x32xf32, #tpu.memory_space<vmem>>, vector<64x32xf32>
    %cst = arith.constant dense<0.000000e+00> : vector<64x128xf32>
    %7 = tpu.matmul %6, %0, %cst {dimension_numbers = #tpu.dot_dimension_numbers<[1], [0], [0], [1], [0, 0, 1, 1], [], []>} : vector<64x32xf32>, vector<32x128xf32>, vector<64x128xf32> -> vector<64x128xf32>
    %8 = vector.broadcast %4 : vector<1x128xf32> to vector<64x128xf32>
    %9 = arith.addf %7, %8 : vector<64x128xf32>
    %c0_13 = arith.constant 0 : index
    %c0_14 = arith.constant 0 : index
    %10 = vector.load %arg10[%c0_13, %c0_14] : memref<64x128xf32, #tpu.memory_space<vmem>>, vector<64x128xf32>
    tpu.vector_store %arg10[%c0_13, %c0_14], %9 {strides = array<i32>} : memref<64x128xf32, #tpu.memory_space<vmem>>, vector<64x128xf32>,
    %cst_15 = arith.constant 0.000000e+00 : f32
    %11 = vector.broadcast %cst_15 : f32 to vector<8x32xf32>
    %cst_16 = arith.constant 0.000000e+00 : f32
    %12 = vector.broadcast %cst_16 : f32 to vector<8x32xf32>
    %cst_17 = arith.constant 0.000000e+00 : f32
    %13 = vector.broadcast %cst_17 : f32 to vector<8x32xf32>
    %cst_18 = arith.constant 0.000000e+00 : f32
    %14 = vector.broadcast %cst_18 : f32 to vector<8x32xf32>
    %c0_19 = arith.constant 0 : index
    %c0_20 = arith.constant 0 : index
    %15 = vector.load %arg10[%c0_19, %c0_20] : memref<64x128xf32, #tpu.memory_space<vmem>>, vector<8x128xf32>
    %cst_21 = arith.constant dense<0.000000e+00> : vector<8x128xf32>
    %16 = tpu.matmul %11, %2, %cst_21 {dimension_numbers = #tpu.dot_dimension_numbers<[1], [0], [0], [1], [0, 0, 1, 1], [], []>} : vector<8x32xf32>, vector<32x128xf32>, vector<8x128xf32> -> vector<8x128xf32>
    %17 = arith.addf %15, %16 : vector<8x128xf32>
    %cst_22 = arith.constant 0.000000e+00 : f32
    %18 = vector.broadcast %cst_22 : f32 to vector<8x128xf32>
    %19 = arith.subf %18, %17 : vector<8x128xf32>
    %20 = math.exp %19 : vector<8x128xf32>
    %cst_23 = arith.constant 1.000000e+00 : f32
    %21 = vector.broadcast %cst_23 : f32 to vector<8x128xf32>
    %22 = arith.addf %21, %20 : vector<8x128xf32>
    %cst_24 = arith.constant 1.000000e+00 : f32
    %23 = vector.broadcast %cst_24 : f32 to vector<8x128xf32>
    %24 = arith.divf %23, %22 : vector<8x128xf32>
    %25 = math.tanh %17 : vector<8x128xf32>
    %26 = vector.extract_strided_slice %24 {offsets = [0, 0], sizes = [8, 32], strides = [1, 1]} : vector<8x128xf32> to vector<8x32xf32>
    %27 = vector.extract_strided_slice %24 {offsets = [0, 32], sizes = [8, 32], strides = [1, 1]} : vector<8x128xf32> to vector<8x32xf32>
    %28 = vector.extract_strided_slice %24 {offsets = [0, 96], sizes = [8, 32], strides = [1, 1]} : vector<8x128xf32> to vector<8x32xf32>
    %29 = vector.extract_strided_slice %25 {offsets = [0, 64], sizes = [8, 32], strides = [1, 1]} : vector<8x128xf32> to vector<8x32xf32>
    %30 = arith.mulf %27, %13 : vector<8x32xf32>
    %31 = arith.mulf %26, %29 : vector<8x32xf32>
    %32 = arith.addf %30, %31 : vector<8x32xf32>
    %33 = math.tanh %32 : vector<8x32xf32>
    %34 = arith.mulf %28, %33 : vector<8x32xf32>
    %cst_25 = arith.constant dense<0.000000e+00> : vector<8x128xf32>
    %35 = tpu.matmul %34, %1, %cst_25 {dimension_numbers = #tpu.dot_dimension_numbers<[1], [0], [0], [1], [0, 0, 1, 1], [], []>} : vector<8x32xf32>, vector<32x128xf32>, vector<8x128xf32> -> vector<8x128xf32>
    %cst_26 = arith.constant dense<0.000000e+00> : vector<8x128xf32>
    %36 = tpu.matmul %12, %3, %cst_26 {dimension_numbers = #tpu.dot_dimension_numbers<[1], [0], [0], [1], [0, 0, 1, 1], [], []>} : vector<8x32xf32>, vector<32x128xf32>, vector<8x128xf32> -> vector<8x128xf32>
    %37 = arith.addf %35, %36 : vector<8x128xf32>
    %38 = vector.broadcast %5 : vector<1x128xf32> to vector<8x128xf32>
    %39 = arith.addf %37, %38 : vector<8x128xf32>
    %cst_27 = arith.constant 0.000000e+00 : f32
    %40 = vector.broadcast %cst_27 : f32 to vector<8x128xf32>
    %41 = arith.subf %40, %39 : vector<8x128xf32>
    %42 = math.exp %41 : vector<8x128xf32>
    %cst_28 = arith.constant 1.000000e+00 : f32
    %43 = vector.broadcast %cst_28 : f32 to vector<8x128xf32>
    %44 = arith.addf %43, %42 : vector<8x128xf32>
    %cst_29 = arith.constant 1.000000e+00 : f32
    %45 = vector.broadcast %cst_29 : f32 to vector<8x128xf32>
    %46 = arith.divf %45, %44 : vector<8x128xf32>
    %47 = math.tanh %39 : vector<8x128xf32>
    %48 = vector.extract_strided_slice %46 {offsets = [0, 0], sizes = [8, 32], strides = [1, 1]} : vector<8x128xf32> to vector<8x32xf32>
    %49 = vector.extract_strided_slice %46 {offsets = [0, 32], sizes = [8, 32], strides = [1, 1]} : vector<8x128xf32> to vector<8x32xf32>
    %50 = vector.extract_strided_slice %46 {offsets = [0, 96], sizes = [8, 32], strides = [1, 1]} : vector<8x128xf32> to vector<8x32xf32>
    %51 = vector.extract_strided_slice %47 {offsets = [0, 64], sizes = [8, 32], strides = [1, 1]} : vector<8x128xf32> to vector<8x32xf32>
    %52 = arith.mulf %49, %14 : vector<8x32xf32>
    %53 = arith.mulf %48, %51 : vector<8x32xf32>
    %54 = arith.addf %52, %53 : vector<8x32xf32>
    %55 = math.tanh %54 : vector<8x32xf32>
    %56 = arith.mulf %50, %55 : vector<8x32xf32>
    %c8 = arith.constant 8 : index
    %c0_30 = arith.constant 0 : index
    %57 = vector.load %arg10[%c8, %c0_30] : memref<64x128xf32, #tpu.memory_space<vmem>>, vector<8x128xf32>
    %cst_31 = arith.constant dense<0.000000e+00> : vector<8x128xf32>
    %58 = tpu.matmul %34, %2, %cst_31 {dimension_numbers = #tpu.dot_dimension_numbers<[1], [0], [0], [1], [0, 0, 1, 1], [], []>} : vector<8x32xf32>, vector<32x128xf32>, vector<8x128xf32> -> vector<8x128xf32>
    %59 = arith.addf %57, %58 : vector<8x128xf32>
    %cst_32 = arith.constant 0.000000e+00 : f32
    %60 = vector.broadcast %cst_32 : f32 to vector<8x128xf32>
    %61 = arith.subf %60, %59 : vector<8x128xf32>
    %62 = math.exp %61 : vector<8x128xf32>
    %cst_33 = arith.constant 1.000000e+00 : f32
    %63 = vector.broadcast %cst_33 : f32 to vector<8x128xf32>
    %64 = arith.addf %63, %62 : vector<8x128xf32>
    %cst_34 = arith.constant 1.000000e+00 : f32
    %65 = vector.broadcast %cst_34 : f32 to vector<8x128xf32>
    %66 = arith.divf %65, %64 : vector<8x128xf32>
    %67 = math.tanh %59 : vector<8x128xf32>
    %68 = vector.extract_strided_slice %66 {offsets = [0, 0], sizes = [8, 32], strides = [1, 1]} : vector<8x128xf32> to vector<8x32xf32>
    %69 = vector.extract_strided_slice %66 {offsets = [0, 32], sizes = [8, 32], strides = [1, 1]} : vector<8x128xf32> to vector<8x32xf32>
    %70 = vector.extract_strided_slice %66 {offsets = [0, 96], sizes = [8, 32], strides = [1, 1]} : vector<8x128xf32> to vector<8x32xf32>
    %71 = vector.extract_strided_slice %67 {offsets = [0, 64], sizes = [8, 32], strides = [1, 1]} : vector<8x128xf32> to vector<8x32xf32>
    %72 = arith.mulf %69, %32 : vector<8x32xf32>
    %73 = arith.mulf %68, %71 : vector<8x32xf32>
    %74 = arith.addf %72, %73 : vector<8x32xf32>
    %75 = math.tanh %74 : vector<8x32xf32>
    %76 = arith.mulf %70, %75 : vector<8x32xf32>
    %cst_35 = arith.constant dense<0.000000e+00> : vector<8x128xf32>
    %77 = tpu.matmul %76, %1, %cst_35 {dimension_numbers = #tpu.dot_dimension_numbers<[1], [0], [0], [1], [0, 0, 1, 1], [], []>} : vector<8x32xf32>, vector<32x128xf32>, vector<8x128xf32> -> vector<8x128xf32>
    %cst_36 = arith.constant dense<0.000000e+00> : vector<8x128xf32>
    %78 = tpu.matmul %56, %3, %cst_36 {dimension_numbers = #tpu.dot_dimension_numbers<[1], [0], [0], [1], [0, 0, 1, 1], [], []>} : vector<8x32xf32>, vector<32x128xf32>, vector<8x128xf32> -> vector<8x128xf32>
    %79 = arith.addf %77, %78 : vector<8x128xf32>
    %80 = vector.broadcast %5 : vector<1x128xf32> to vector<8x128xf32>
    %81 = arith.addf %79, %80 : vector<8x128xf32>
    %cst_37 = arith.constant 0.000000e+00 : f32
    %82 = vector.broadcast %cst_37 : f32 to vector<8x128xf32>
    %83 = arith.subf %82, %81 : vector<8x128xf32>
    %84 = math.exp %83 : vector<8x128xf32>
    %cst_38 = arith.constant 1.000000e+00 : f32
    %85 = vector.broadcast %cst_38 : f32 to vector<8x128xf32>
    %86 = arith.addf %85, %84 : vector<8x128xf32>
    %cst_39 = arith.constant 1.000000e+00 : f32
    %87 = vector.broadcast %cst_39 : f32 to vector<8x128xf32>
    %88 = arith.divf %87, %86 : vector<8x128xf32>
    %89 = math.tanh %81 : vector<8x128xf32>
    %90 = vector.extract_strided_slice %88 {offsets = [0, 0], sizes = [8, 32], strides = [1, 1]} : vector<8x128xf32> to vector<8x32xf32>
    %91 = vector.extract_strided_slice %88 {offsets = [0, 32], sizes = [8, 32], strides = [1, 1]} : vector<8x128xf32> to vector<8x32xf32>
    %92 = vector.extract_strided_slice %88 {offsets = [0, 96], sizes = [8, 32], strides = [1, 1]} : vector<8x128xf32> to vector<8x32xf32>
    %93 = vector.extract_strided_slice %89 {offsets = [0, 64], sizes = [8, 32], strides = [1, 1]} : vector<8x128xf32> to vector<8x32xf32>
    %94 = arith.mulf %91, %54 : vector<8x32xf32>
    %95 = arith.mulf %90, %93 : vector<8x32xf32>
    %96 = arith.addf %94, %95 : vector<8x32xf32>
    %97 = math.tanh %96 : vector<8x32xf32>
    %98 = arith.mulf %92, %97 : vector<8x32xf32>
    %c16 = arith.constant 16 : index
    %c0_40 = arith.constant 0 : index
    %99 = vector.load %arg10[%c16, %c0_40] : memref<64x128xf32, #tpu.memory_space<vmem>>, vector<8x128xf32>
    %cst_41 = arith.constant dense<0.000000e+00> : vector<8x128xf32>
    %100 = tpu.matmul %76, %2, %cst_41 {dimension_numbers = #tpu.dot_dimension_numbers<[1], [0], [0], [1], [0, 0, 1, 1], [], []>} : vector<8x32xf32>, vector<32x128xf32>, vector<8x128xf32> -> vector<8x128xf32>
    %101 = arith.addf %99, %100 : vector<8x128xf32>
    %cst_42 = arith.constant 0.000000e+00 : f32
    %102 = vector.broadcast %cst_42 : f32 to vector<8x128xf32>
    %103 = arith.subf %102, %101 : vector<8x128xf32>
    %104 = math.exp %103 : vector<8x128xf32>
    %cst_43 = arith.constant 1.000000e+00 : f32
    %105 = vector.broadcast %cst_43 : f32 to vector<8x128xf32>
    %106 = arith.addf %105, %104 : vector<8x128xf32>
    %cst_44 = arith.constant 1.000000e+00 : f32
    %107 = vector.broadcast %cst_44 : f32 to vector<8x128xf32>
    %108 = arith.divf %107, %106 : vector<8x128xf32>
    %109 = math.tanh %101 : vector<8x128xf32>
    %110 = vector.extract_strided_slice %108 {offsets = [0, 0], sizes = [8, 32], strides = [1, 1]} : vector<8x128xf32> to vector<8x32xf32>
    %111 = vector.extract_strided_slice %108 {offsets = [0, 32], sizes = [8, 32], strides = [1, 1]} : vector<8x128xf32> to vector<8x32xf32>
    %112 = vector.extract_strided_slice %108 {offsets = [0, 96], sizes = [8, 32], strides = [1, 1]} : vector<8x128xf32> to vector<8x32xf32>
    %113 = vector.extract_strided_slice %109 {offsets = [0, 64], sizes = [8, 32], strides = [1, 1]} : vector<8x128xf32> to vector<8x32xf32>
    %114 = arith.mulf %111, %74 : vector<8x32xf32>
    %115 = arith.mulf %110, %113 : vector<8x32xf32>
    %116 = arith.addf %114, %115 : vector<8x32xf32>
    %117 = math.tanh %116 : vector<8x32xf32>
    %118 = arith.mulf %112, %117 : vector<8x32xf32>
    %cst_45 = arith.constant dense<0.000000e+00> : vector<8x128xf32>
    %119 = tpu.matmul %118, %1, %cst_45 {dimension_numbers = #tpu.dot_dimension_numbers<[1], [0], [0], [1], [0, 0, 1, 1], [], []>} : vector<8x32xf32>, vector<32x128xf32>, vector<8x128xf32> -> vector<8x128xf32>
    %cst_46 = arith.constant dense<0.000000e+00> : vector<8x128xf32>
    %120 = tpu.matmul %98, %3, %cst_46 {dimension_numbers = #tpu.dot_dimension_numbers<[1], [0], [0], [1], [0, 0, 1, 1], [], []>} : vector<8x32xf32>, vector<32x128xf32>, vector<8x128xf32> -> vector<8x128xf32>
    %121 = arith.addf %119, %120 : vector<8x128xf32>
    %122 = vector.broadcast %5 : vector<1x128xf32> to vector<8x128xf32>
    %123 = arith.addf %121, %122 : vector<8x128xf32>
    %cst_47 = arith.constant 0.000000e+00 : f32
    %124 = vector.broadcast %cst_47 : f32 to vector<8x128xf32>
    %125 = arith.subf %124, %123 : vector<8x128xf32>
    %126 = math.exp %125 : vector<8x128xf32>
    %cst_48 = arith.constant 1.000000e+00 : f32
    %127 = vector.broadcast %cst_48 : f32 to vector<8x128xf32>
    %128 = arith.addf %127, %126 : vector<8x128xf32>
    %cst_49 = arith.constant 1.000000e+00 : f32
    %129 = vector.broadcast %cst_49 : f32 to vector<8x128xf32>
    %130 = arith.divf %129, %128 : vector<8x128xf32>
    %131 = math.tanh %123 : vector<8x128xf32>
    %132 = vector.extract_strided_slice %130 {offsets = [0, 0], sizes = [8, 32], strides = [1, 1]} : vector<8x128xf32> to vector<8x32xf32>
    %133 = vector.extract_strided_slice %130 {offsets = [0, 32], sizes = [8, 32], strides = [1, 1]} : vector<8x128xf32> to vector<8x32xf32>
    %134 = vector.extract_strided_slice %130 {offsets = [0, 96], sizes = [8, 32], strides = [1, 1]} : vector<8x128xf32> to vector<8x32xf32>
    %135 = vector.extract_strided_slice %131 {offsets = [0, 64], sizes = [8, 32], strides = [1, 1]} : vector<8x128xf32> to vector<8x32xf32>
    %136 = arith.mulf %133, %96 : vector<8x32xf32>
    %137 = arith.mulf %132, %135 : vector<8x32xf32>
    %138 = arith.addf %136, %137 : vector<8x32xf32>
    %139 = math.tanh %138 : vector<8x32xf32>
    %140 = arith.mulf %134, %139 : vector<8x32xf32>
    %c24 = arith.constant 24 : index
    %c0_50 = arith.constant 0 : index
    %141 = vector.load %arg10[%c24, %c0_50] : memref<64x128xf32, #tpu.memory_space<vmem>>, vector<8x128xf32>
    %cst_51 = arith.constant dense<0.000000e+00> : vector<8x128xf32>
    %142 = tpu.matmul %118, %2, %cst_51 {dimension_numbers = #tpu.dot_dimension_numbers<[1], [0], [0], [1], [0, 0, 1, 1], [], []>} : vector<8x32xf32>, vector<32x128xf32>, vector<8x128xf32> -> vector<8x128xf32>
    %143 = arith.addf %141, %142 : vector<8x128xf32>
    %cst_52 = arith.constant 0.000000e+00 : f32
    %144 = vector.broadcast %cst_52 : f32 to vector<8x128xf32>
    %145 = arith.subf %144, %143 : vector<8x128xf32>
    %146 = math.exp %145 : vector<8x128xf32>
    %cst_53 = arith.constant 1.000000e+00 : f32
    %147 = vector.broadcast %cst_53 : f32 to vector<8x128xf32>
    %148 = arith.addf %147, %146 : vector<8x128xf32>
    %cst_54 = arith.constant 1.000000e+00 : f32
    %149 = vector.broadcast %cst_54 : f32 to vector<8x128xf32>
    %150 = arith.divf %149, %148 : vector<8x128xf32>
    %151 = math.tanh %143 : vector<8x128xf32>
    %152 = vector.extract_strided_slice %150 {offsets = [0, 0], sizes = [8, 32], strides = [1, 1]} : vector<8x128xf32> to vector<8x32xf32>
    %153 = vector.extract_strided_slice %150 {offsets = [0, 32], sizes = [8, 32], strides = [1, 1]} : vector<8x128xf32> to vector<8x32xf32>
    %154 = vector.extract_strided_slice %150 {offsets = [0, 96], sizes = [8, 32], strides = [1, 1]} : vector<8x128xf32> to vector<8x32xf32>
    %155 = vector.extract_strided_slice %151 {offsets = [0, 64], sizes = [8, 32], strides = [1, 1]} : vector<8x128xf32> to vector<8x32xf32>
    %156 = arith.mulf %153, %116 : vector<8x32xf32>
    %157 = arith.mulf %152, %155 : vector<8x32xf32>
    %158 = arith.addf %156, %157 : vector<8x32xf32>
    %159 = math.tanh %158 : vector<8x32xf32>
    %160 = arith.mulf %154, %159 : vector<8x32xf32>
    %cst_55 = arith.constant dense<0.000000e+00> : vector<8x128xf32>
    %161 = tpu.matmul %160, %1, %cst_55 {dimension_numbers = #tpu.dot_dimension_numbers<[1], [0], [0], [1], [0, 0, 1, 1], [], []>} : vector<8x32xf32>, vector<32x128xf32>, vector<8x128xf32> -> vector<8x128xf32>
    %cst_56 = arith.constant dense<0.000000e+00> : vector<8x128xf32>
    %162 = tpu.matmul %140, %3, %cst_56 {dimension_numbers = #tpu.dot_dimension_numbers<[1], [0], [0], [1], [0, 0, 1, 1], [], []>} : vector<8x32xf32>, vector<32x128xf32>, vector<8x128xf32> -> vector<8x128xf32>
    %163 = arith.addf %161, %162 : vector<8x128xf32>
    %164 = vector.broadcast %5 : vector<1x128xf32> to vector<8x128xf32>
    %165 = arith.addf %163, %164 : vector<8x128xf32>
    %cst_57 = arith.constant 0.000000e+00 : f32
    %166 = vector.broadcast %cst_57 : f32 to vector<8x128xf32>
    %167 = arith.subf %166, %165 : vector<8x128xf32>
    %168 = math.exp %167 : vector<8x128xf32>
    %cst_58 = arith.constant 1.000000e+00 : f32
    %169 = vector.broadcast %cst_58 : f32 to vector<8x128xf32>
    %170 = arith.addf %169, %168 : vector<8x128xf32>
    %cst_59 = arith.constant 1.000000e+00 : f32
    %171 = vector.broadcast %cst_59 : f32 to vector<8x128xf32>
    %172 = arith.divf %171, %170 : vector<8x128xf32>
    %173 = math.tanh %165 : vector<8x128xf32>
    %174 = vector.extract_strided_slice %172 {offsets = [0, 0], sizes = [8, 32], strides = [1, 1]} : vector<8x128xf32> to vector<8x32xf32>
    %175 = vector.extract_strided_slice %172 {offsets = [0, 32], sizes = [8, 32], strides = [1, 1]} : vector<8x128xf32> to vector<8x32xf32>
    %176 = vector.extract_strided_slice %172 {offsets = [0, 96], sizes = [8, 32], strides = [1, 1]} : vector<8x128xf32> to vector<8x32xf32>
    %177 = vector.extract_strided_slice %173 {offsets = [0, 64], sizes = [8, 32], strides = [1, 1]} : vector<8x128xf32> to vector<8x32xf32>
    %178 = arith.mulf %175, %138 : vector<8x32xf32>
    %179 = arith.mulf %174, %177 : vector<8x32xf32>
    %180 = arith.addf %178, %179 : vector<8x32xf32>
    %181 = math.tanh %180 : vector<8x32xf32>
    %182 = arith.mulf %176, %181 : vector<8x32xf32>
    %c32 = arith.constant 32 : index
    %c0_60 = arith.constant 0 : index
    %183 = vector.load %arg10[%c32, %c0_60] : memref<64x128xf32, #tpu.memory_space<vmem>>, vector<8x128xf32>
    %cst_61 = arith.constant dense<0.000000e+00> : vector<8x128xf32>
    %184 = tpu.matmul %160, %2, %cst_61 {dimension_numbers = #tpu.dot_dimension_numbers<[1], [0], [0], [1], [0, 0, 1, 1], [], []>} : vector<8x32xf32>, vector<32x128xf32>, vector<8x128xf32> -> vector<8x128xf32>
    %185 = arith.addf %183, %184 : vector<8x128xf32>
    %cst_62 = arith.constant 0.000000e+00 : f32
    %186 = vector.broadcast %cst_62 : f32 to vector<8x128xf32>
    %187 = arith.subf %186, %185 : vector<8x128xf32>
    %188 = math.exp %187 : vector<8x128xf32>
    %cst_63 = arith.constant 1.000000e+00 : f32
    %189 = vector.broadcast %cst_63 : f32 to vector<8x128xf32>
    %190 = arith.addf %189, %188 : vector<8x128xf32>
    %cst_64 = arith.constant 1.000000e+00 : f32
    %191 = vector.broadcast %cst_64 : f32 to vector<8x128xf32>
    %192 = arith.divf %191, %190 : vector<8x128xf32>
    %193 = math.tanh %185 : vector<8x128xf32>
    %194 = vector.extract_strided_slice %192 {offsets = [0, 0], sizes = [8, 32], strides = [1, 1]} : vector<8x128xf32> to vector<8x32xf32>
    %195 = vector.extract_strided_slice %192 {offsets = [0, 32], sizes = [8, 32], strides = [1, 1]} : vector<8x128xf32> to vector<8x32xf32>
    %196 = vector.extract_strided_slice %192 {offsets = [0, 96], sizes = [8, 32], strides = [1, 1]} : vector<8x128xf32> to vector<8x32xf32>
    %197 = vector.extract_strided_slice %193 {offsets = [0, 64], sizes = [8, 32], strides = [1, 1]} : vector<8x128xf32> to vector<8x32xf32>
    %198 = arith.mulf %195, %158 : vector<8x32xf32>
    %199 = arith.mulf %194, %197 : vector<8x32xf32>
    %200 = arith.addf %198, %199 : vector<8x32xf32>
    %201 = math.tanh %200 : vector<8x32xf32>
    %202 = arith.mulf %196, %201 : vector<8x32xf32>
    %cst_65 = arith.constant dense<0.000000e+00> : vector<8x128xf32>
    %203 = tpu.matmul %202, %1, %cst_65 {dimension_numbers = #tpu.dot_dimension_numbers<[1], [0], [0], [1], [0, 0, 1, 1], [], []>} : vector<8x32xf32>, vector<32x128xf32>, vector<8x128xf32> -> vector<8x128xf32>
    %cst_66 = arith.constant dense<0.000000e+00> : vector<8x128xf32>
    %204 = tpu.matmul %182, %3, %cst_66 {dimension_numbers = #tpu.dot_dimension_numbers<[1], [0], [0], [1], [0, 0, 1, 1], [], []>} : vector<8x32xf32>, vector<32x128xf32>, vector<8x128xf32> -> vector<8x128xf32>
    %205 = arith.addf %203, %204 : vector<8x128xf32>
    %206 = vector.broadcast %5 : vector<1x128xf32> to vector<8x128xf32>
    %207 = arith.addf %205, %206 : vector<8x128xf32>
    %cst_67 = arith.constant 0.000000e+00 : f32
    %208 = vector.broadcast %cst_67 : f32 to vector<8x128xf32>
    %209 = arith.subf %208, %207 : vector<8x128xf32>
    %210 = math.exp %209 : vector<8x128xf32>
    %cst_68 = arith.constant 1.000000e+00 : f32
    %211 = vector.broadcast %cst_68 : f32 to vector<8x128xf32>
    %212 = arith.addf %211, %210 : vector<8x128xf32>
    %cst_69 = arith.constant 1.000000e+00 : f32
    %213 = vector.broadcast %cst_69 : f32 to vector<8x128xf32>
    %214 = arith.divf %213, %212 : vector<8x128xf32>
    %215 = math.tanh %207 : vector<8x128xf32>
    %216 = vector.extract_strided_slice %214 {offsets = [0, 0], sizes = [8, 32], strides = [1, 1]} : vector<8x128xf32> to vector<8x32xf32>
    %217 = vector.extract_strided_slice %214 {offsets = [0, 32], sizes = [8, 32], strides = [1, 1]} : vector<8x128xf32> to vector<8x32xf32>
    %218 = vector.extract_strided_slice %214 {offsets = [0, 96], sizes = [8, 32], strides = [1, 1]} : vector<8x128xf32> to vector<8x32xf32>
    %219 = vector.extract_strided_slice %215 {offsets = [0, 64], sizes = [8, 32], strides = [1, 1]} : vector<8x128xf32> to vector<8x32xf32>
    %220 = arith.mulf %217, %180 : vector<8x32xf32>
    %221 = arith.mulf %216, %219 : vector<8x32xf32>
    %222 = arith.addf %220, %221 : vector<8x32xf32>
    %223 = math.tanh %222 : vector<8x32xf32>
    %224 = arith.mulf %218, %223 : vector<8x32xf32>
    %c40 = arith.constant 40 : index
    %c0_70 = arith.constant 0 : index
    %225 = vector.load %arg10[%c40, %c0_70] : memref<64x128xf32, #tpu.memory_space<vmem>>, vector<8x128xf32>
    %cst_71 = arith.constant dense<0.000000e+00> : vector<8x128xf32>
    %226 = tpu.matmul %202, %2, %cst_71 {dimension_numbers = #tpu.dot_dimension_numbers<[1], [0], [0], [1], [0, 0, 1, 1], [], []>} : vector<8x32xf32>, vector<32x128xf32>, vector<8x128xf32> -> vector<8x128xf32>
    %227 = arith.addf %225, %226 : vector<8x128xf32>
    %cst_72 = arith.constant 0.000000e+00 : f32
    %228 = vector.broadcast %cst_72 : f32 to vector<8x128xf32>
    %229 = arith.subf %228, %227 : vector<8x128xf32>
    %230 = math.exp %229 : vector<8x128xf32>
    %cst_73 = arith.constant 1.000000e+00 : f32
    %231 = vector.broadcast %cst_73 : f32 to vector<8x128xf32>
    %232 = arith.addf %231, %230 : vector<8x128xf32>
    %cst_74 = arith.constant 1.000000e+00 : f32
    %233 = vector.broadcast %cst_74 : f32 to vector<8x128xf32>
    %234 = arith.divf %233, %232 : vector<8x128xf32>
    %235 = math.tanh %227 : vector<8x128xf32>
    %236 = vector.extract_strided_slice %234 {offsets = [0, 0], sizes = [8, 32], strides = [1, 1]} : vector<8x128xf32> to vector<8x32xf32>
    %237 = vector.extract_strided_slice %234 {offsets = [0, 32], sizes = [8, 32], strides = [1, 1]} : vector<8x128xf32> to vector<8x32xf32>
    %238 = vector.extract_strided_slice %234 {offsets = [0, 96], sizes = [8, 32], strides = [1, 1]} : vector<8x128xf32> to vector<8x32xf32>
    %239 = vector.extract_strided_slice %235 {offsets = [0, 64], sizes = [8, 32], strides = [1, 1]} : vector<8x128xf32> to vector<8x32xf32>
    %240 = arith.mulf %237, %200 : vector<8x32xf32>
    %241 = arith.mulf %236, %239 : vector<8x32xf32>
    %242 = arith.addf %240, %241 : vector<8x32xf32>
    %243 = math.tanh %242 : vector<8x32xf32>
    %244 = arith.mulf %238, %243 : vector<8x32xf32>
    %cst_75 = arith.constant dense<0.000000e+00> : vector<8x128xf32>
    %245 = tpu.matmul %244, %1, %cst_75 {dimension_numbers = #tpu.dot_dimension_numbers<[1], [0], [0], [1], [0, 0, 1, 1], [], []>} : vector<8x32xf32>, vector<32x128xf32>, vector<8x128xf32> -> vector<8x128xf32>
    %cst_76 = arith.constant dense<0.000000e+00> : vector<8x128xf32>
    %246 = tpu.matmul %224, %3, %cst_76 {dimension_numbers = #tpu.dot_dimension_numbers<[1], [0], [0], [1], [0, 0, 1, 1], [], []>} : vector<8x32xf32>, vector<32x128xf32>, vector<8x128xf32> -> vector<8x128xf32>
    %247 = arith.addf %245, %246 : vector<8x128xf32>
    %248 = vector.broadcast %5 : vector<1x128xf32> to vector<8x128xf32>
    %249 = arith.addf %247, %248 : vector<8x128xf32>
    %cst_77 = arith.constant 0.000000e+00 : f32
    %250 = vector.broadcast %cst_77 : f32 to vector<8x128xf32>
    %251 = arith.subf %250, %249 : vector<8x128xf32>
    %252 = math.exp %251 : vector<8x128xf32>
    %cst_78 = arith.constant 1.000000e+00 : f32
    %253 = vector.broadcast %cst_78 : f32 to vector<8x128xf32>
    %254 = arith.addf %253, %252 : vector<8x128xf32>
    %cst_79 = arith.constant 1.000000e+00 : f32
    %255 = vector.broadcast %cst_79 : f32 to vector<8x128xf32>
    %256 = arith.divf %255, %254 : vector<8x128xf32>
    %257 = math.tanh %249 : vector<8x128xf32>
    %258 = vector.extract_strided_slice %256 {offsets = [0, 0], sizes = [8, 32], strides = [1, 1]} : vector<8x128xf32> to vector<8x32xf32>
    %259 = vector.extract_strided_slice %256 {offsets = [0, 32], sizes = [8, 32], strides = [1, 1]} : vector<8x128xf32> to vector<8x32xf32>
    %260 = vector.extract_strided_slice %256 {offsets = [0, 96], sizes = [8, 32], strides = [1, 1]} : vector<8x128xf32> to vector<8x32xf32>
    %261 = vector.extract_strided_slice %257 {offsets = [0, 64], sizes = [8, 32], strides = [1, 1]} : vector<8x128xf32> to vector<8x32xf32>
    %262 = arith.mulf %259, %222 : vector<8x32xf32>
    %263 = arith.mulf %258, %261 : vector<8x32xf32>
    %264 = arith.addf %262, %263 : vector<8x32xf32>
    %265 = math.tanh %264 : vector<8x32xf32>
    %266 = arith.mulf %260, %265 : vector<8x32xf32>
    %c48 = arith.constant 48 : index
    %c0_80 = arith.constant 0 : index
    %267 = vector.load %arg10[%c48, %c0_80] : memref<64x128xf32, #tpu.memory_space<vmem>>, vector<8x128xf32>
    %cst_81 = arith.constant dense<0.000000e+00> : vector<8x128xf32>
    %268 = tpu.matmul %244, %2, %cst_81 {dimension_numbers = #tpu.dot_dimension_numbers<[1], [0], [0], [1], [0, 0, 1, 1], [], []>} : vector<8x32xf32>, vector<32x128xf32>, vector<8x128xf32> -> vector<8x128xf32>
    %269 = arith.addf %267, %268 : vector<8x128xf32>
    %cst_82 = arith.constant 0.000000e+00 : f32
    %270 = vector.broadcast %cst_82 : f32 to vector<8x128xf32>
    %271 = arith.subf %270, %269 : vector<8x128xf32>
    %272 = math.exp %271 : vector<8x128xf32>
    %cst_83 = arith.constant 1.000000e+00 : f32
    %273 = vector.broadcast %cst_83 : f32 to vector<8x128xf32>
    %274 = arith.addf %273, %272 : vector<8x128xf32>
    %cst_84 = arith.constant 1.000000e+00 : f32
    %275 = vector.broadcast %cst_84 : f32 to vector<8x128xf32>
    %276 = arith.divf %275, %274 : vector<8x128xf32>
    %277 = math.tanh %269 : vector<8x128xf32>
    %278 = vector.extract_strided_slice %276 {offsets = [0, 0], sizes = [8, 32], strides = [1, 1]} : vector<8x128xf32> to vector<8x32xf32>
    %279 = vector.extract_strided_slice %276 {offsets = [0, 32], sizes = [8, 32], strides = [1, 1]} : vector<8x128xf32> to vector<8x32xf32>
    %280 = vector.extract_strided_slice %276 {offsets = [0, 96], sizes = [8, 32], strides = [1, 1]} : vector<8x128xf32> to vector<8x32xf32>
    %281 = vector.extract_strided_slice %277 {offsets = [0, 64], sizes = [8, 32], strides = [1, 1]} : vector<8x128xf32> to vector<8x32xf32>
    %282 = arith.mulf %279, %242 : vector<8x32xf32>
    %283 = arith.mulf %278, %281 : vector<8x32xf32>
    %284 = arith.addf %282, %283 : vector<8x32xf32>
    %285 = math.tanh %284 : vector<8x32xf32>
    %286 = arith.mulf %280, %285 : vector<8x32xf32>
    %cst_85 = arith.constant dense<0.000000e+00> : vector<8x128xf32>
    %287 = tpu.matmul %286, %1, %cst_85 {dimension_numbers = #tpu.dot_dimension_numbers<[1], [0], [0], [1], [0, 0, 1, 1], [], []>} : vector<8x32xf32>, vector<32x128xf32>, vector<8x128xf32> -> vector<8x128xf32>
    %cst_86 = arith.constant dense<0.000000e+00> : vector<8x128xf32>
    %288 = tpu.matmul %266, %3, %cst_86 {dimension_numbers = #tpu.dot_dimension_numbers<[1], [0], [0], [1], [0, 0, 1, 1], [], []>} : vector<8x32xf32>, vector<32x128xf32>, vector<8x128xf32> -> vector<8x128xf32>
    %289 = arith.addf %287, %288 : vector<8x128xf32>
    %290 = vector.broadcast %5 : vector<1x128xf32> to vector<8x128xf32>
    %291 = arith.addf %289, %290 : vector<8x128xf32>
    %cst_87 = arith.constant 0.000000e+00 : f32
    %292 = vector.broadcast %cst_87 : f32 to vector<8x128xf32>
    %293 = arith.subf %292, %291 : vector<8x128xf32>
    %294 = math.exp %293 : vector<8x128xf32>
    %cst_88 = arith.constant 1.000000e+00 : f32
    %295 = vector.broadcast %cst_88 : f32 to vector<8x128xf32>
    %296 = arith.addf %295, %294 : vector<8x128xf32>
    %cst_89 = arith.constant 1.000000e+00 : f32
    %297 = vector.broadcast %cst_89 : f32 to vector<8x128xf32>
    %298 = arith.divf %297, %296 : vector<8x128xf32>
    %299 = math.tanh %291 : vector<8x128xf32>
    %300 = vector.extract_strided_slice %298 {offsets = [0, 0], sizes = [8, 32], strides = [1, 1]} : vector<8x128xf32> to vector<8x32xf32>
    %301 = vector.extract_strided_slice %298 {offsets = [0, 32], sizes = [8, 32], strides = [1, 1]} : vector<8x128xf32> to vector<8x32xf32>
    %302 = vector.extract_strided_slice %298 {offsets = [0, 96], sizes = [8, 32], strides = [1, 1]} : vector<8x128xf32> to vector<8x32xf32>
    %303 = vector.extract_strided_slice %299 {offsets = [0, 64], sizes = [8, 32], strides = [1, 1]} : vector<8x128xf32> to vector<8x32xf32>
    %304 = arith.mulf %301, %264 : vector<8x32xf32>
    %305 = arith.mulf %300, %303 : vector<8x32xf32>
    %306 = arith.addf %304, %305 : vector<8x32xf32>
    %307 = math.tanh %306 : vector<8x32xf32>
    %308 = arith.mulf %302, %307 : vector<8x32xf32>
    %c56 = arith.constant 56 : index
    %c0_90 = arith.constant 0 : index
    %309 = vector.load %arg10[%c56, %c0_90] : memref<64x128xf32, #tpu.memory_space<vmem>>, vector<8x128xf32>
    %cst_91 = arith.constant dense<0.000000e+00> : vector<8x128xf32>
    %310 = tpu.matmul %286, %2, %cst_91 {dimension_numbers = #tpu.dot_dimension_numbers<[1], [0], [0], [1], [0, 0, 1, 1], [], []>} : vector<8x32xf32>, vector<32x128xf32>, vector<8x128xf32> -> vector<8x128xf32>
    %311 = arith.addf %309, %310 : vector<8x128xf32>
    %cst_92 = arith.constant 0.000000e+00 : f32
    %312 = vector.broadcast %cst_92 : f32 to vector<8x128xf32>
    %313 = arith.subf %312, %311 : vector<8x128xf32>
    %314 = math.exp %313 : vector<8x128xf32>
    %cst_93 = arith.constant 1.000000e+00 : f32
    %315 = vector.broadcast %cst_93 : f32 to vector<8x128xf32>
    %316 = arith.addf %315, %314 : vector<8x128xf32>
    %cst_94 = arith.constant 1.000000e+00 : f32
    %317 = vector.broadcast %cst_94 : f32 to vector<8x128xf32>
    %318 = arith.divf %317, %316 : vector<8x128xf32>
    %319 = math.tanh %311 : vector<8x128xf32>
    %320 = vector.extract_strided_slice %318 {offsets = [0, 0], sizes = [8, 32], strides = [1, 1]} : vector<8x128xf32> to vector<8x32xf32>
    %321 = vector.extract_strided_slice %318 {offsets = [0, 32], sizes = [8, 32], strides = [1, 1]} : vector<8x128xf32> to vector<8x32xf32>
    %322 = vector.extract_strided_slice %318 {offsets = [0, 96], sizes = [8, 32], strides = [1, 1]} : vector<8x128xf32> to vector<8x32xf32>
    %323 = vector.extract_strided_slice %319 {offsets = [0, 64], sizes = [8, 32], strides = [1, 1]} : vector<8x128xf32> to vector<8x32xf32>
    %324 = arith.mulf %321, %284 : vector<8x32xf32>
    %325 = arith.mulf %320, %323 : vector<8x32xf32>
    %326 = arith.addf %324, %325 : vector<8x32xf32>
    %327 = math.tanh %326 : vector<8x32xf32>
    %328 = arith.mulf %322, %327 : vector<8x32xf32>
    %cst_95 = arith.constant dense<0.000000e+00> : vector<8x128xf32>
    %329 = tpu.matmul %328, %1, %cst_95 {dimension_numbers = #tpu.dot_dimension_numbers<[1], [0], [0], [1], [0, 0, 1, 1], [], []>} : vector<8x32xf32>, vector<32x128xf32>, vector<8x128xf32> -> vector<8x128xf32>
    %cst_96 = arith.constant dense<0.000000e+00> : vector<8x128xf32>
    %330 = tpu.matmul %308, %3, %cst_96 {dimension_numbers = #tpu.dot_dimension_numbers<[1], [0], [0], [1], [0, 0, 1, 1], [], []>} : vector<8x32xf32>, vector<32x128xf32>, vector<8x128xf32> -> vector<8x128xf32>
    %331 = arith.addf %329, %330 : vector<8x128xf32>
    %332 = vector.broadcast %5 : vector<1x128xf32> to vector<8x128xf32>
    %333 = arith.addf %331, %332 : vector<8x128xf32>
    %cst_97 = arith.constant 0.000000e+00 : f32
    %334 = vector.broadcast %cst_97 : f32 to vector<8x128xf32>
    %335 = arith.subf %334, %333 : vector<8x128xf32>
    %336 = math.exp %335 : vector<8x128xf32>
    %cst_98 = arith.constant 1.000000e+00 : f32
    %337 = vector.broadcast %cst_98 : f32 to vector<8x128xf32>
    %338 = arith.addf %337, %336 : vector<8x128xf32>
    %cst_99 = arith.constant 1.000000e+00 : f32
    %339 = vector.broadcast %cst_99 : f32 to vector<8x128xf32>
    %340 = arith.divf %339, %338 : vector<8x128xf32>
    %341 = math.tanh %333 : vector<8x128xf32>
    %342 = vector.extract_strided_slice %340 {offsets = [0, 0], sizes = [8, 32], strides = [1, 1]} : vector<8x128xf32> to vector<8x32xf32>
    %343 = vector.extract_strided_slice %340 {offsets = [0, 32], sizes = [8, 32], strides = [1, 1]} : vector<8x128xf32> to vector<8x32xf32>
    %344 = vector.extract_strided_slice %340 {offsets = [0, 96], sizes = [8, 32], strides = [1, 1]} : vector<8x128xf32> to vector<8x32xf32>
    %345 = vector.extract_strided_slice %341 {offsets = [0, 64], sizes = [8, 32], strides = [1, 1]} : vector<8x128xf32> to vector<8x32xf32>
    %346 = arith.mulf %343, %306 : vector<8x32xf32>
    %347 = arith.mulf %342, %345 : vector<8x32xf32>
    %348 = arith.addf %346, %347 : vector<8x32xf32>
    %349 = math.tanh %348 : vector<8x32xf32>
    %350 = arith.mulf %344, %349 : vector<8x32xf32>
    %c0_100 = arith.constant 0 : index
    %c0_101 = arith.constant 0 : index
    %351 = vector.load %arg7[%c0_100, %c0_101] : memref<32x4xf32, #tpu.memory_space<vmem>>, vector<32x4xf32>
    %cst_102 = arith.constant dense<0.000000e+00> : vector<8x4xf32>
    %352 = tpu.matmul %350, %351, %cst_102 {dimension_numbers = #tpu.dot_dimension_numbers<[1], [0], [0], [1], [0, 0, 1, 1], [], []>} : vector<8x32xf32>, vector<32x4xf32>, vector<8x4xf32> -> vector<8x4xf32>
    %c0_103 = arith.constant 0 : index
    %c0_104 = arith.constant 0 : index
    %353 = vector.load %arg8[%c0_103, %c0_104] : memref<1x4xf32, #tpu.memory_space<vmem>>, vector<1x4xf32>
    %354 = vector.broadcast %353 : vector<1x4xf32> to vector<8x4xf32>
    %355 = arith.addf %352, %354 : vector<8x4xf32>
    %c0_105 = arith.constant 0 : index
    %c0_106 = arith.constant 0 : index
    %356 = vector.load %arg9[%c0_105, %c0_106] : memref<8x4xf32, #tpu.memory_space<vmem>>, vector<8x4xf32>
    tpu.vector_store %arg9[%c0_105, %c0_106], %355 {strides = array<i32>} : memref<8x4xf32, #tpu.memory_space<vmem>>, vector<8x4xf32>,
    return
  }
}

</mosaic_0001>

<llo_original>
// kernel: lstm_model_forward.1
$region0: #{lstm_model_forward.1}
  #allocation0 [shape = 'u32[]', space=smem, size = 0x4, offset = 0x4, fixed_abs, tag = 'smem constant byte address 0x4 - core index']
  #allocation1 [shape = 'u32[144,128]{1,0:T(1,128)}', space=vmem, size = 0x12000, scoped, tag = 'internal scratch']
  #allocation2 [shape = 'f32[64,128]{1,0:T(8,128)}', space=vmem, size = 0x8000, scoped, tag = 'scratch operand']
  %s0 = inlined_call_operand.vmem [shape: f32[64,32], index: 0, kind: input, shape index: {}]
  %s1 = inlined_call_operand.vmem [shape: f32[32,128], index: 1, kind: input, shape index: {}]
  %s2 = inlined_call_operand.vmem [shape: f32[32,128], index: 2, kind: input, shape index: {}]
  %s3 = inlined_call_operand.vmem [shape: f32[1,128], index: 3, kind: input, shape index: {}]
  %s4 = inlined_call_operand.vmem [shape: f32[32,128], index: 4, kind: input, shape index: {}]
  %s5 = inlined_call_operand.vmem [shape: f32[32,128], index: 5, kind: input, shape index: {}]
  %s6 = inlined_call_operand.vmem [shape: f32[1,128], index: 6, kind: input, shape index: {}]
  %s7 = inlined_call_operand.vmem [shape: f32[32,4], index: 7, kind: input, shape index: {}]
  %s8 = inlined_call_operand.vmem [shape: f32[1,4], index: 8, kind: input, shape index: {}]
  %s9 = inlined_call_operand.vmem [shape: f32[8,4], index: 9, kind: output, shape index: {}]
  %s10 = sld [smem:[#allocation0]]
  $region46: #{lstm_model_forward.1} parent=0
    _
  %s12 = ssub.s32 1, %s10
  %s13 = scalar_select 0, %s12, %s10
  // Predicated region
  $region2: #{lstm_model_forward.1} parent=0 // pred_check
    _
  $region3: #{lstm_model_forward.1} parent=0 // pred_check_branch
    %15 = sbr.rel (0) target = $region5
  $region4: #{lstm_model_forward.1} parent=0 // pred_region
    _
  $region5: #{lstm_model_forward.1} parent=0 // pred_fallthru
    _
  // Predicated region
  $region6: #{lstm_model_forward.1} parent=0 // pred_check
    _
  $region7: #{lstm_model_forward.1} parent=0 // pred_check_branch
    %17 = sbr.rel (0) target = $region9
  $region8: #{lstm_model_forward.1} parent=0 // pred_region
    _
  $region9: #{lstm_model_forward.1} parent=0 // pred_fallthru
    _
  // Predicated region
  $region10: #{lstm_model_forward.1} parent=0 // pred_check
    _
  $region11: #{lstm_model_forward.1} parent=0 // pred_check_branch
    %19 = sbr.rel (0) target = $region13
  $region12: #{lstm_model_forward.1} parent=0 // pred_region
    _
  $region13: #{lstm_model_forward.1} parent=0 // pred_fallthru
    _
  // Predicated region
  $region14: #{lstm_model_forward.1} parent=0 // pred_check
    _
  $region15: #{lstm_model_forward.1} parent=0 // pred_check_branch
    %21 = sbr.rel (0) target = $region17
  $region16: #{lstm_model_forward.1} parent=0 // pred_region
    _
  $region17: #{lstm_model_forward.1} parent=0 // pred_fallthru
    _
  // Predicated region
  $region18: #{lstm_model_forward.1} parent=0 // pred_check
    _
  $region19: #{lstm_model_forward.1} parent=0 // pred_check_branch
    %23 = sbr.rel (0) target = $region21
  $region20: #{lstm_model_forward.1} parent=0 // pred_region
    _
  $region21: #{lstm_model_forward.1} parent=0 // pred_fallthru
    _
  // Predicated region
  $region22: #{lstm_model_forward.1} parent=0 // pred_check
    _
  $region23: #{lstm_model_forward.1} parent=0 // pred_check_branch
    %25 = sbr.rel (0) target = $region25
  $region24: #{lstm_model_forward.1} parent=0 // pred_region
    _
  $region25: #{lstm_model_forward.1} parent=0 // pred_fallthru
    _
  // Predicated region
  $region26: #{lstm_model_forward.1} parent=0 // pred_check
    _
  $region27: #{lstm_model_forward.1} parent=0 // pred_check_branch
    %27 = sbr.rel (0) target = $region29
  $region28: #{lstm_model_forward.1} parent=0 // pred_region
    _
  $region29: #{lstm_model_forward.1} parent=0 // pred_fallthru
    _
  // Predicated region
  $region30: #{lstm_model_forward.1} parent=0 // pred_check
    _
  $region31: #{lstm_model_forward.1} parent=0 // pred_check_branch
    %29 = sbr.rel (0) target = $region33
  $region32: #{lstm_model_forward.1} parent=0 // pred_region
    _
  $region33: #{lstm_model_forward.1} parent=0 // pred_fallthru
    _
  // Predicated region
  $region34: #{lstm_model_forward.1} parent=0 // pred_check
    _
  $region35: #{lstm_model_forward.1} parent=0 // pred_check_branch
    %31 = sbr.rel (0) target = $region37
  $region36: #{lstm_model_forward.1} parent=0 // pred_region
    _
  $region37: #{lstm_model_forward.1} parent=0 // pred_fallthru
    _
  %v32 = vld [vmem:[%s1] sm:$0xff]
  %v33 = vld [vmem:[%s1 + $0x8] sm:$0xff]
  %v34 = vld [vmem:[%s1 + $0x10] sm:$0xff]
  %v35 = vld [vmem:[%s1 + $0x18] sm:$0xff]
  %v36 = vld [vmem:[%s4] sm:$0xff]
  %v37 = vld [vmem:[%s4 + $0x8] sm:$0xff]
  %v38 = vld [vmem:[%s4 + $0x10] sm:$0xff]
  %v39 = vld [vmem:[%s4 + $0x18] sm:$0xff]
  %v40 = vld [vmem:[%s2] sm:$0xff]
  %v41 = vld [vmem:[%s2 + $0x8] sm:$0xff]
  %v42 = vld [vmem:[%s2 + $0x10] sm:$0xff]
  %v43 = vld [vmem:[%s2 + $0x18] sm:$0xff]
  %v44 = vld [vmem:[%s5] sm:$0xff]
  %v45 = vld [vmem:[%s5 + $0x8] sm:$0xff]
  %v46 = vld [vmem:[%s5 + $0x10] sm:$0xff]
  %v47 = vld [vmem:[%s5 + $0x18] sm:$0xff]
  %v48 = vld [vmem:[%s3] sm:$0x1]
  %v49 = vld [vmem:[%s6] sm:$0x1]
  %v50 = vld [vmem:[%s0] sm:$0xff]
  %v51 = vld [vmem:[%s0 + $0x8] sm:$0xff]
  %v52 = vld [vmem:[%s0 + $0x10] sm:$0xff]
  %v53 = vld [vmem:[%s0 + $0x18] sm:$0xff]
  %v54 = vld [vmem:[%s0 + $0x20] sm:$0xff]
  %v55 = vld [vmem:[%s0 + $0x28] sm:$0xff]
  %v56 = vld [vmem:[%s0 + $0x30] sm:$0xff]
  %v57 = vld [vmem:[%s0 + $0x38] sm:$0xff]
  %v59 = vlaneseq
  %v60 = vshrl.u32 %v59, 7
  %v61 = vsub.s32 0, %v60
  %v62 = vrot.slane %v48, %v61
  %vm64 = vcmask 261120
  %v66 = vsel %vm64, %v50, 0
  %v69 = vsel %vm64, %v51, 0
  %v72 = vsel %vm64, %v52, 0
  %v75 = vsel %vm64, %v53, 0
  %v78 = vsel %vm64, %v54, 0
  %v81 = vsel %vm64, %v55, 0
  %v84 = vsel %vm64, %v56, 0
  %v87 = vsel %vm64, %v57, 0
  %89 = vmatprep.subr.mxu0 0.0
  %90 = vmatpush1.msra.mxu0 0.0
  %91 = vmatprep.subr.mxu0 0.0
  %92 = vmatpush1.msra.mxu0 0.0
  %93 = vmatprep.subr.mxu0 0.0
  %94 = vmatpush1.msra.mxu0 0.0
  %95 = vmatprep.subr.mxu0 0.0
  %96 = vmatpush1.msra.mxu0 0.0
  %97 = vmatprep.subr.mxu0 0.0
  %98 = vmatpush1.msra.mxu0 0.0
  %99 = vmatprep.subr.mxu0 0.0
  %100 = vmatpush1.msra.mxu0 0.0
  %101 = vmatprep.subr.mxu0 0.0
  %102 = vmatpush1.msra.mxu0 0.0
  %103 = vmatprep.subr.mxu0 0.0
  %104 = vmatpush1.msra.mxu0 0.0
  %105 = vmatprep.subr.mxu0 0.0
  %106 = vmatpush1.msra.mxu0 0.0
  %107 = vmatprep.subr.mxu0 0.0
  %108 = vmatpush1.msra.mxu0 0.0
  %109 = vmatprep.subr.mxu0 0.0
  %110 = vmatpush1.msra.mxu0 0.0
  %111 = vmatprep.subr.mxu0 0.0
  %112 = vmatpush1.msra.mxu0 0.0
  %113 = vmatprep.subr.mxu0 0.0
  %114 = vmatpush1.msra.mxu0 %v35
  %115 = vmatprep.subr.mxu0 0.0
  %116 = vmatpush1.msra.mxu0 %v34
  %117 = vmatprep.subr.mxu0 0.0
  %118 = vmatpush1.msra.mxu0 %v33
  %119 = vmatprep.subr.mxu0 0.0
  %120 = vmatpush1.msra.mxu0 %v32
  %121 = vmatprep.subr.mxu0 0.0
  %122 = vmatpush2.msra.mxu0 0.0
  %123 = vmatprep.subr.mxu0 0.0
  %124 = vmatpush2.msra.mxu0 0.0
  %125 = vmatprep.subr.mxu0 0.0
  %126 = vmatpush2.msra.mxu0 0.0
  %127 = vmatprep.subr.mxu0 0.0
  %128 = vmatpush2.msra.mxu0 0.0
  %129 = vmatprep.subr.mxu0 0.0
  %130 = vmatpush2.msra.mxu0 0.0
  %131 = vmatprep.subr.mxu0 0.0
  %132 = vmatpush2.msra.mxu0 0.0
  %133 = vmatprep.subr.mxu0 0.0
  %134 = vmatpush2.msra.mxu0 0.0
  %135 = vmatprep.subr.mxu0 0.0
  %136 = vmatpush2.msra.mxu0 0.0
  %137 = vmatprep.subr.mxu0 0.0
  %138 = vmatpush2.msra.mxu0 0.0
  %139 = vmatprep.subr.mxu0 0.0
  %140 = vmatpush2.msra.mxu0 0.0
  %141 = vmatprep.subr.mxu0 0.0
  %142 = vmatpush2.msra.mxu0 0.0
  %143 = vmatprep.subr.mxu0 0.0
  %144 = vmatpush2.msra.mxu0 0.0
  %145 = vmatprep.subr.mxu0 0.0
  %146 = vmatpush2.msra.mxu0 0.0
  %147 = vmatprep.subr.mxu0 0.0
  %148 = vmatpush2.msra.mxu0 0.0
  %149 = vmatprep.subr.mxu0 0.0
  %150 = vmatpush2.msra.mxu0 0.0
  %151 = vmatprep.subr.mxu0 0.0
  %152 = vmatpush2.msra.mxu0 0.0
  %153 = vmatprep.mubr.f32.mxu0 0.0
  %154 = vmatmul.mubr.f32.gmra.mxu0 %v66
  %v155 = vpop.f32.mrf.mxu0
  %v156 = vadd.f32 %v62, %v155
  %v157 = vpop.f32.mrf.mxu0
  %158 = vmatprep.mubr.f32.mxu0 0.0
  %159 = vmatmul.mubr.f32.gmra.mxu0 %v69
  %v160 = vpop.f32.mrf.mxu0
  %v161 = vadd.f32 %v62, %v160
  %v162 = vpop.f32.mrf.mxu0
  %163 = vmatprep.mubr.f32.mxu0 0.0
  %164 = vmatmul.mubr.f32.gmra.mxu0 %v72
  %v165 = vpop.f32.mrf.mxu0
  %v166 = vadd.f32 %v62, %v165
  %v167 = vpop.f32.mrf.mxu0
  %168 = vmatprep.mubr.f32.mxu0 0.0
  %169 = vmatmul.mubr.f32.gmra.mxu0 %v75
  %v170 = vpop.f32.mrf.mxu0
  %v171 = vadd.f32 %v62, %v170
  %v172 = vpop.f32.mrf.mxu0
  %173 = vmatprep.mubr.f32.mxu0 0.0
  %174 = vmatmul.mubr.f32.gmra.mxu0 %v78
  %v175 = vpop.f32.mrf.mxu0
  %v176 = vadd.f32 %v62, %v175
  %v177 = vpop.f32.mrf.mxu0
  %178 = vmatprep.mubr.f32.mxu0 0.0
  %179 = vmatmul.mubr.f32.gmra.mxu0 %v81
  %v180 = vpop.f32.mrf.mxu0
  %v181 = vadd.f32 %v62, %v180
  %v182 = vpop.f32.mrf.mxu0
  %183 = vmatprep.mubr.f32.mxu0 0.0
  %184 = vmatmul.mubr.f32.gmra.mxu0 %v84
  %v185 = vpop.f32.mrf.mxu0
  %v186 = vadd.f32 %v62, %v185
  %v187 = vpop.f32.mrf.mxu0
  %188 = vmatprep.mubr.f32.mxu0 0.0
  %189 = vmatmul.mubr.f32.gmra.mxu0 %v87
  %v190 = vpop.f32.mrf.mxu0
  %v191 = vadd.f32 %v62, %v190
  %v192 = vpop.f32.mrf.mxu0
  %193 = vdwg.mxu0
  %194 = vst [vmem:[#allocation2] sm:$0xff] %v156
  %195 = vst [vmem:[#allocation2 + $0x8] sm:$0xff] %v161
  %196 = vst [vmem:[#allocation2 + $0x10] sm:$0xff] %v166
  %197 = vst [vmem:[#allocation2 + $0x18] sm:$0xff] %v171
  %198 = vst [vmem:[#allocation2 + $0x20] sm:$0xff] %v176
  %199 = vst [vmem:[#allocation2 + $0x28] sm:$0xff] %v181
  %200 = vst [vmem:[#allocation2 + $0x30] sm:$0xff] %v186
  %201 = vst [vmem:[#allocation2 + $0x38] sm:$0xff] %v191
  %v202 = vld [vmem:[#allocation2] sm:$0xff]
  %v204 = vsel %vm64, 0.0, 0
  %206 = vmatprep.subr.mxu0 0.0
  %207 = vmatpush1.msra.mxu0 0.0
  %208 = vmatprep.subr.mxu0 0.0
  %209 = vmatpush1.msra.mxu0 0.0
  %210 = vmatprep.subr.mxu0 0.0
  %211 = vmatpush1.msra.mxu0 0.0
  %212 = vmatprep.subr.mxu0 0.0
  %213 = vmatpush1.msra.mxu0 0.0
  %214 = vmatprep.subr.mxu0 0.0
  %215 = vmatpush1.msra.mxu0 0.0
  %216 = vmatprep.subr.mxu0 0.0
  %217 = vmatpush1.msra.mxu0 0.0
  %218 = vmatprep.subr.mxu0 0.0
  %219 = vmatpush1.msra.mxu0 0.0
  %220 = vmatprep.subr.mxu0 0.0
  %221 = vmatpush1.msra.mxu0 0.0
  %222 = vmatprep.subr.mxu0 0.0
  %223 = vmatpush1.msra.mxu0 0.0
  %224 = vmatprep.subr.mxu0 0.0
  %225 = vmatpush1.msra.mxu0 0.0
  %226 = vmatprep.subr.mxu0 0.0
  %227 = vmatpush1.msra.mxu0 0.0
  %228 = vmatprep.subr.mxu0 0.0
  %229 = vmatpush1.msra.mxu0 0.0
  %230 = vmatprep.subr.mxu0 0.0
  %231 = vmatpush1.msra.mxu0 %v43
  %232 = vmatprep.subr.mxu0 0.0
  %233 = vmatpush1.msra.mxu0 %v42
  %234 = vmatprep.subr.mxu0 0.0
  %235 = vmatpush1.msra.mxu0 %v41
  %236 = vmatprep.subr.mxu0 0.0
  %237 = vmatpush1.msra.mxu0 %v40
  %238 = vmatprep.subr.mxu0 0.0
  %239 = vmatpush2.msra.mxu0 0.0
  %240 = vmatprep.subr.mxu0 0.0
  %241 = vmatpush2.msra.mxu0 0.0
  %242 = vmatprep.subr.mxu0 0.0
  %243 = vmatpush2.msra.mxu0 0.0
  %244 = vmatprep.subr.mxu0 0.0
  %245 = vmatpush2.msra.mxu0 0.0
  %246 = vmatprep.subr.mxu0 0.0
  %247 = vmatpush2.msra.mxu0 0.0
  %248 = vmatprep.subr.mxu0 0.0
  %249 = vmatpush2.msra.mxu0 0.0
  %250 = vmatprep.subr.mxu0 0.0
  %251 = vmatpush2.msra.mxu0 0.0
  %252 = vmatprep.subr.mxu0 0.0
  %253 = vmatpush2.msra.mxu0 0.0
  %254 = vmatprep.subr.mxu0 0.0
  %255 = vmatpush2.msra.mxu0 0.0
  %256 = vmatprep.subr.mxu0 0.0
  %257 = vmatpush2.msra.mxu0 0.0
  %258 = vmatprep.subr.mxu0 0.0
  %259 = vmatpush2.msra.mxu0 0.0
  %260 = vmatprep.subr.mxu0 0.0
  %261 = vmatpush2.msra.mxu0 0.0
  %262 = vmatprep.subr.mxu0 0.0
  %263 = vmatpush2.msra.mxu0 0.0
  %264 = vmatprep.subr.mxu0 0.0
  %265 = vmatpush2.msra.mxu0 0.0
  %266 = vmatprep.subr.mxu0 0.0
  %267 = vmatpush2.msra.mxu0 0.0
  %268 = vmatprep.subr.mxu0 0.0
  %269 = vmatpush2.msra.mxu0 0.0
  %270 = vmatprep.mubr.f32.mxu0 0.0
  %271 = vmatmul.mubr.f32.gmra.mxu0 %v204
  %v272 = vpop.f32.mrf.mxu0
  %v273 = vadd.f32 0.0, %v272
  %v274 = vpop.f32.mrf.mxu0
  %275 = vdwg.mxu0
  %v276 = vadd.f32 %v202, %v273
  %v277 = vsub.f32 0.0, %v276
  %v278 = vmul.f32 %v277, 1.442695
  %v279 = vpow.pop %v278
  %v280 = vadd.f32 %v279, 1.0
  %v281 = vrcp.pop %v280
  %v282 = vmul.f32 1.0, %v281
  %v283 = vtanh.pop %v276
  %v284 = vmul.f32 %v282, 0.0
  %286 = vrot.lane.b32.xlu0 %v283, 64
  %v287 = vpop.permute.xlu0 %286
  %v289 = vmul.f32 %v282, %v287
  %291 = vrot.lane.b32.xlu0 %v289, 32
  %v292 = vpop.permute.xlu0 %291
  %v294 = vadd.f32 %v284, %v292
  %v295 = vtanh.pop %v294
  %297 = vrot.lane.b32.xlu0 %v295, 64
  %v298 = vpop.permute.xlu0 %297
  %v300 = vmul.f32 %v282, %v298
  %301 = vmatprep.subr.mxu0 0.0
  %302 = vmatpush1.msra.mxu0 0.0
  %303 = vmatprep.subr.mxu0 0.0
  %304 = vmatpush1.msra.mxu0 0.0
  %305 = vmatprep.subr.mxu0 0.0
  %306 = vmatpush1.msra.mxu0 0.0
  %307 = vmatprep.subr.mxu0 0.0
  %308 = vmatpush1.msra.mxu0 0.0
  %309 = vmatprep.subr.mxu0 0.0
  %310 = vmatpush1.msra.mxu0 0.0
  %311 = vmatprep.subr.mxu0 0.0
  %312 = vmatpush1.msra.mxu0 0.0
  %313 = vmatprep.subr.mxu0 0.0
  %314 = vmatpush1.msra.mxu0 0.0
  %315 = vmatprep.subr.mxu0 0.0
  %316 = vmatpush1.msra.mxu0 0.0
  %317 = vmatprep.subr.mxu0 0.0
  %318 = vmatpush1.msra.mxu0 0.0
  %319 = vmatprep.subr.mxu0 0.0
  %320 = vmatpush1.msra.mxu0 0.0
  %321 = vmatprep.subr.mxu0 0.0
  %322 = vmatpush1.msra.mxu0 0.0
  %323 = vmatprep.subr.mxu0 0.0
  %324 = vmatpush1.msra.mxu0 0.0
  %325 = vmatprep.subr.mxu0 0.0
  %326 = vmatpush1.msra.mxu0 %v47
  %327 = vmatprep.subr.mxu0 0.0
  %328 = vmatpush1.msra.mxu0 %v46
  %329 = vmatprep.subr.mxu0 0.0
  %330 = vmatpush1.msra.mxu0 %v45
  %331 = vmatprep.subr.mxu0 0.0
  %332 = vmatpush1.msra.mxu0 %v44
  %333 = vmatprep.subr.mxu0 0.0
  %334 = vmatpush2.msra.mxu0 0.0
  %335 = vmatprep.subr.mxu0 0.0
  %336 = vmatpush2.msra.mxu0 0.0
  %337 = vmatprep.subr.mxu0 0.0
  %338 = vmatpush2.msra.mxu0 0.0
  %339 = vmatprep.subr.mxu0 0.0
  %340 = vmatpush2.msra.mxu0 0.0
  %341 = vmatprep.subr.mxu0 0.0
  %342 = vmatpush2.msra.mxu0 0.0
  %343 = vmatprep.subr.mxu0 0.0
  %344 = vmatpush2.msra.mxu0 0.0
  %345 = vmatprep.subr.mxu0 0.0
  %346 = vmatpush2.msra.mxu0 0.0
  %347 = vmatprep.subr.mxu0 0.0
  %348 = vmatpush2.msra.mxu0 0.0
  %349 = vmatprep.subr.mxu0 0.0
  %350 = vmatpush2.msra.mxu0 0.0
  %351 = vmatprep.subr.mxu0 0.0
  %352 = vmatpush2.msra.mxu0 0.0
  %353 = vmatprep.subr.mxu0 0.0
  %354 = vmatpush2.msra.mxu0 0.0
  %355 = vmatprep.subr.mxu0 0.0
  %356 = vmatpush2.msra.mxu0 0.0
  %357 = vmatprep.subr.mxu0 0.0
  %358 = vmatpush2.msra.mxu0 0.0
  %359 = vmatprep.subr.mxu0 0.0
  %360 = vmatpush2.msra.mxu0 0.0
  %361 = vmatprep.subr.mxu0 0.0
  %362 = vmatpush2.msra.mxu0 0.0
  %363 = vmatprep.subr.mxu0 0.0
  %364 = vmatpush2.msra.mxu0 0.0
  %365 = vmatprep.mubr.f32.mxu0 0.0
  %366 = vmatmul.mubr.f32.gmra.mxu0 %v204
  %v367 = vpop.f32.mrf.mxu0
  %v368 = vadd.f32 0.0, %v367
  %v369 = vpop.f32.mrf.mxu0
  %370 = vdwg.mxu0
  %372 = vrot.lane.b32.xlu0 %v300, 32
  %v373 = vpop.permute.xlu0 %372
  %v374 = vsel %vm64, %v373, 0
  %376 = vmatprep.subr.mxu0 0.0
  %377 = vmatpush1.msra.mxu0 0.0
  %378 = vmatprep.subr.mxu0 0.0
  %379 = vmatpush1.msra.mxu0 0.0
  %380 = vmatprep.subr.mxu0 0.0
  %381 = vmatpush1.msra.mxu0 0.0
  %382 = vmatprep.subr.mxu0 0.0
  %383 = vmatpush1.msra.mxu0 0.0
  %384 = vmatprep.subr.mxu0 0.0
  %385 = vmatpush1.msra.mxu0 0.0
  %386 = vmatprep.subr.mxu0 0.0
  %387 = vmatpush1.msra.mxu0 0.0
  %388 = vmatprep.subr.mxu0 0.0
  %389 = vmatpush1.msra.mxu0 0.0
  %390 = vmatprep.subr.mxu0 0.0
  %391 = vmatpush1.msra.mxu0 0.0
  %392 = vmatprep.subr.mxu0 0.0
  %393 = vmatpush1.msra.mxu0 0.0
  %394 = vmatprep.subr.mxu0 0.0
  %395 = vmatpush1.msra.mxu0 0.0
  %396 = vmatprep.subr.mxu0 0.0
  %397 = vmatpush1.msra.mxu0 0.0
  %398 = vmatprep.subr.mxu0 0.0
  %399 = vmatpush1.msra.mxu0 0.0
  %400 = vmatprep.subr.mxu0 0.0
  %401 = vmatpush1.msra.mxu0 %v39
  %402 = vmatprep.subr.mxu0 0.0
  %403 = vmatpush1.msra.mxu0 %v38
  %404 = vmatprep.subr.mxu0 0.0
  %405 = vmatpush1.msra.mxu0 %v37
  %406 = vmatprep.subr.mxu0 0.0
  %407 = vmatpush1.msra.mxu0 %v36
  %408 = vmatprep.subr.mxu0 0.0
  %409 = vmatpush2.msra.mxu0 0.0
  %410 = vmatprep.subr.mxu0 0.0
  %411 = vmatpush2.msra.mxu0 0.0
  %412 = vmatprep.subr.mxu0 0.0
  %413 = vmatpush2.msra.mxu0 0.0
  %414 = vmatprep.subr.mxu0 0.0
  %415 = vmatpush2.msra.mxu0 0.0
  %416 = vmatprep.subr.mxu0 0.0
  %417 = vmatpush2.msra.mxu0 0.0
  %418 = vmatprep.subr.mxu0 0.0
  %419 = vmatpush2.msra.mxu0 0.0
  %420 = vmatprep.subr.mxu0 0.0
  %421 = vmatpush2.msra.mxu0 0.0
  %422 = vmatprep.subr.mxu0 0.0
  %423 = vmatpush2.msra.mxu0 0.0
  %424 = vmatprep.subr.mxu0 0.0
  %425 = vmatpush2.msra.mxu0 0.0
  %426 = vmatprep.subr.mxu0 0.0
  %427 = vmatpush2.msra.mxu0 0.0
  %428 = vmatprep.subr.mxu0 0.0
  %429 = vmatpush2.msra.mxu0 0.0
  %430 = vmatprep.subr.mxu0 0.0
  %431 = vmatpush2.msra.mxu0 0.0
  %432 = vmatprep.subr.mxu0 0.0
  %433 = vmatpush2.msra.mxu0 0.0
  %434 = vmatprep.subr.mxu0 0.0
  %435 = vmatpush2.msra.mxu0 0.0
  %436 = vmatprep.subr.mxu0 0.0
  %437 = vmatpush2.msra.mxu0 0.0
  %438 = vmatprep.subr.mxu0 0.0
  %439 = vmatpush2.msra.mxu0 0.0
  %440 = vmatprep.mubr.f32.mxu0 0.0
  %441 = vmatmul.mubr.f32.gmra.mxu0 %v374
  %v442 = vpop.f32.mrf.mxu0
  %v443 = vadd.f32 %v368, %v442
  %v444 = vpop.f32.mrf.mxu0
  %445 = vdwg.mxu0
  %v447 = vlaneseq
  %v448 = vshrl.u32 %v447, 7
  %v449 = vsub.s32 0, %v448
  %v450 = vrot.slane %v49, %v449
  %v452 = vadd.f32 %v443, %v450
  %v453 = vsub.f32 0.0, %v452
  %v454 = vmul.f32 %v453, 1.442695
  %v455 = vpow.pop %v454
  %v456 = vadd.f32 %v455, 1.0
  %v457 = vrcp.pop %v456
  %v458 = vmul.f32 1.0, %v457
  %v459 = vtanh.pop %v452
  %v460 = vmul.f32 %v458, 0.0
  %462 = vrot.lane.b32.xlu0 %v459, 64
  %v463 = vpop.permute.xlu0 %462
  %v465 = vmul.f32 %v458, %v463
  %467 = vrot.lane.b32.xlu0 %v465, 32
  %v468 = vpop.permute.xlu0 %467
  %v470 = vadd.f32 %v460, %v468
  %v471 = vtanh.pop %v470
  %473 = vrot.lane.b32.xlu0 %v471, 64
  %v474 = vpop.permute.xlu0 %473
  %v476 = vmul.f32 %v458, %v474
  %v477 = vld [vmem:[#allocation2 + $0x8] sm:$0xff]
  %478 = vmatprep.subr.mxu0 0.0
  %479 = vmatpush1.msra.mxu0 0.0
  %480 = vmatprep.subr.mxu0 0.0
  %481 = vmatpush1.msra.mxu0 0.0
  %482 = vmatprep.subr.mxu0 0.0
  %483 = vmatpush1.msra.mxu0 0.0
  %484 = vmatprep.subr.mxu0 0.0
  %485 = vmatpush1.msra.mxu0 0.0
  %486 = vmatprep.subr.mxu0 0.0
  %487 = vmatpush1.msra.mxu0 0.0
  %488 = vmatprep.subr.mxu0 0.0
  %489 = vmatpush1.msra.mxu0 0.0
  %490 = vmatprep.subr.mxu0 0.0
  %491 = vmatpush1.msra.mxu0 0.0
  %492 = vmatprep.subr.mxu0 0.0
  %493 = vmatpush1.msra.mxu0 0.0
  %494 = vmatprep.subr.mxu0 0.0
  %495 = vmatpush1.msra.mxu0 0.0
  %496 = vmatprep.subr.mxu0 0.0
  %497 = vmatpush1.msra.mxu0 0.0
  %498 = vmatprep.subr.mxu0 0.0
  %499 = vmatpush1.msra.mxu0 0.0
  %500 = vmatprep.subr.mxu0 0.0
  %501 = vmatpush1.msra.mxu0 0.0
  %502 = vmatprep.subr.mxu0 0.0
  %503 = vmatpush1.msra.mxu0 %v43
  %504 = vmatprep.subr.mxu0 0.0
  %505 = vmatpush1.msra.mxu0 %v42
  %506 = vmatprep.subr.mxu0 0.0
  %507 = vmatpush1.msra.mxu0 %v41
  %508 = vmatprep.subr.mxu0 0.0
  %509 = vmatpush1.msra.mxu0 %v40
  %510 = vmatprep.subr.mxu0 0.0
  %511 = vmatpush2.msra.mxu0 0.0
  %512 = vmatprep.subr.mxu0 0.0
  %513 = vmatpush2.msra.mxu0 0.0
  %514 = vmatprep.subr.mxu0 0.0
  %515 = vmatpush2.msra.mxu0 0.0
  %516 = vmatprep.subr.mxu0 0.0
  %517 = vmatpush2.msra.mxu0 0.0
  %518 = vmatprep.subr.mxu0 0.0
  %519 = vmatpush2.msra.mxu0 0.0
  %520 = vmatprep.subr.mxu0 0.0
  %521 = vmatpush2.msra.mxu0 0.0
  %522 = vmatprep.subr.mxu0 0.0
  %523 = vmatpush2.msra.mxu0 0.0
  %524 = vmatprep.subr.mxu0 0.0
  %525 = vmatpush2.msra.mxu0 0.0
  %526 = vmatprep.subr.mxu0 0.0
  %527 = vmatpush2.msra.mxu0 0.0
  %528 = vmatprep.subr.mxu0 0.0
  %529 = vmatpush2.msra.mxu0 0.0
  %530 = vmatprep.subr.mxu0 0.0
  %531 = vmatpush2.msra.mxu0 0.0
  %532 = vmatprep.subr.mxu0 0.0
  %533 = vmatpush2.msra.mxu0 0.0
  %534 = vmatprep.subr.mxu0 0.0
  %535 = vmatpush2.msra.mxu0 0.0
  %536 = vmatprep.subr.mxu0 0.0
  %537 = vmatpush2.msra.mxu0 0.0
  %538 = vmatprep.subr.mxu0 0.0
  %539 = vmatpush2.msra.mxu0 0.0
  %540 = vmatprep.subr.mxu0 0.0
  %541 = vmatpush2.msra.mxu0 0.0
  %542 = vmatprep.mubr.f32.mxu0 0.0
  %543 = vmatmul.mubr.f32.gmra.mxu0 %v374
  %v544 = vpop.f32.mrf.mxu0
  %v545 = vadd.f32 0.0, %v544
  %v546 = vpop.f32.mrf.mxu0
  %547 = vdwg.mxu0
  %v548 = vadd.f32 %v477, %v545
  %v549 = vsub.f32 0.0, %v548
  %v550 = vmul.f32 %v549, 1.442695
  %v551 = vpow.pop %v550
  %v552 = vadd.f32 %v551, 1.0
  %v553 = vrcp.pop %v552
  %v554 = vmul.f32 1.0, %v553
  %v555 = vtanh.pop %v548
  %v556 = vmul.f32 %v554, %v294
  %558 = vrot.lane.b32.xlu0 %v555, 64
  %v559 = vpop.permute.xlu0 %558
  %v561 = vmul.f32 %v554, %v559
  %563 = vrot.lane.b32.xlu0 %v561, 32
  %v564 = vpop.permute.xlu0 %563
  %v566 = vadd.f32 %v556, %v564
  %v567 = vtanh.pop %v566
  %569 = vrot.lane.b32.xlu0 %v567, 64
  %v570 = vpop.permute.xlu0 %569
  %v572 = vmul.f32 %v554, %v570
  %574 = vrot.lane.b32.xlu0 %v476, 32
  %v575 = vpop.permute.xlu0 %574
  %v576 = vsel %vm64, %v575, 0
  %578 = vmatprep.subr.mxu0 0.0
  %579 = vmatpush1.msra.mxu0 0.0
  %580 = vmatprep.subr.mxu0 0.0
  %581 = vmatpush1.msra.mxu0 0.0
  %582 = vmatprep.subr.mxu0 0.0
  %583 = vmatpush1.msra.mxu0 0.0
  %584 = vmatprep.subr.mxu0 0.0
  %585 = vmatpush1.msra.mxu0 0.0
  %586 = vmatprep.subr.mxu0 0.0
  %587 = vmatpush1.msra.mxu0 0.0
  %588 = vmatprep.subr.mxu0 0.0
  %589 = vmatpush1.msra.mxu0 0.0
  %590 = vmatprep.subr.mxu0 0.0
  %591 = vmatpush1.msra.mxu0 0.0
  %592 = vmatprep.subr.mxu0 0.0
  %593 = vmatpush1.msra.mxu0 0.0
  %594 = vmatprep.subr.mxu0 0.0
  %595 = vmatpush1.msra.mxu0 0.0
  %596 = vmatprep.subr.mxu0 0.0
  %597 = vmatpush1.msra.mxu0 0.0
  %598 = vmatprep.subr.mxu0 0.0
  %599 = vmatpush1.msra.mxu0 0.0
  %600 = vmatprep.subr.mxu0 0.0
  %601 = vmatpush1.msra.mxu0 0.0
  %602 = vmatprep.subr.mxu0 0.0
  %603 = vmatpush1.msra.mxu0 %v47
  %604 = vmatprep.subr.mxu0 0.0
  %605 = vmatpush1.msra.mxu0 %v46
  %606 = vmatprep.subr.mxu0 0.0
  %607 = vmatpush1.msra.mxu0 %v45
  %608 = vmatprep.subr.mxu0 0.0
  %609 = vmatpush1.msra.mxu0 %v44
  %610 = vmatprep.subr.mxu0 0.0
  %611 = vmatpush2.msra.mxu0 0.0
  %612 = vmatprep.subr.mxu0 0.0
  %613 = vmatpush2.msra.mxu0 0.0
  %614 = vmatprep.subr.mxu0 0.0
  %615 = vmatpush2.msra.mxu0 0.0
  %616 = vmatprep.subr.mxu0 0.0
  %617 = vmatpush2.msra.mxu0 0.0
  %618 = vmatprep.subr.mxu0 0.0
  %619 = vmatpush2.msra.mxu0 0.0
  %620 = vmatprep.subr.mxu0 0.0
  %621 = vmatpush2.msra.mxu0 0.0
  %622 = vmatprep.subr.mxu0 0.0
  %623 = vmatpush2.msra.mxu0 0.0
  %624 = vmatprep.subr.mxu0 0.0
  %625 = vmatpush2.msra.mxu0 0.0
  %626 = vmatprep.subr.mxu0 0.0
  %627 = vmatpush2.msra.mxu0 0.0
  %628 = vmatprep.subr.mxu0 0.0
  %629 = vmatpush2.msra.mxu0 0.0
  %630 = vmatprep.subr.mxu0 0.0
  %631 = vmatpush2.msra.mxu0 0.0
  %632 = vmatprep.subr.mxu0 0.0
  %633 = vmatpush2.msra.mxu0 0.0
  %634 = vmatprep.subr.mxu0 0.0
  %635 = vmatpush2.msra.mxu0 0.0
  %636 = vmatprep.subr.mxu0 0.0
  %637 = vmatpush2.msra.mxu0 0.0
  %638 = vmatprep.subr.mxu0 0.0
  %639 = vmatpush2.msra.mxu0 0.0
  %640 = vmatprep.subr.mxu0 0.0
  %641 = vmatpush2.msra.mxu0 0.0
  %642 = vmatprep.mubr.f32.mxu0 0.0
  %643 = vmatmul.mubr.f32.gmra.mxu0 %v576
  %v644 = vpop.f32.mrf.mxu0
  %v645 = vadd.f32 0.0, %v644
  %v646 = vpop.f32.mrf.mxu0
  %647 = vdwg.mxu0
  %649 = vrot.lane.b32.xlu0 %v572, 32
  %v650 = vpop.permute.xlu0 %649
  %v651 = vsel %vm64, %v650, 0
  %653 = vmatprep.subr.mxu0 0.0
  %654 = vmatpush1.msra.mxu0 0.0
  %655 = vmatprep.subr.mxu0 0.0
  %656 = vmatpush1.msra.mxu0 0.0
  %657 = vmatprep.subr.mxu0 0.0
  %658 = vmatpush1.msra.mxu0 0.0
  %659 = vmatprep.subr.mxu0 0.0
  %660 = vmatpush1.msra.mxu0 0.0
  %661 = vmatprep.subr.mxu0 0.0
  %662 = vmatpush1.msra.mxu0 0.0
  %663 = vmatprep.subr.mxu0 0.0
  %664 = vmatpush1.msra.mxu0 0.0
  %665 = vmatprep.subr.mxu0 0.0
  %666 = vmatpush1.msra.mxu0 0.0
  %667 = vmatprep.subr.mxu0 0.0
  %668 = vmatpush1.msra.mxu0 0.0
  %669 = vmatprep.subr.mxu0 0.0
  %670 = vmatpush1.msra.mxu0 0.0
  %671 = vmatprep.subr.mxu0 0.0
  %672 = vmatpush1.msra.mxu0 0.0
  %673 = vmatprep.subr.mxu0 0.0
  %674 = vmatpush1.msra.mxu0 0.0
  %675 = vmatprep.subr.mxu0 0.0
  %676 = vmatpush1.msra.mxu0 0.0
  %677 = vmatprep.subr.mxu0 0.0
  %678 = vmatpush1.msra.mxu0 %v39
  %679 = vmatprep.subr.mxu0 0.0
  %680 = vmatpush1.msra.mxu0 %v38
  %681 = vmatprep.subr.mxu0 0.0
  %682 = vmatpush1.msra.mxu0 %v37
  %683 = vmatprep.subr.mxu0 0.0
  %684 = vmatpush1.msra.mxu0 %v36
  %685 = vmatprep.subr.mxu0 0.0
  %686 = vmatpush2.msra.mxu0 0.0
  %687 = vmatprep.subr.mxu0 0.0
  %688 = vmatpush2.msra.mxu0 0.0
  %689 = vmatprep.subr.mxu0 0.0
  %690 = vmatpush2.msra.mxu0 0.0
  %691 = vmatprep.subr.mxu0 0.0
  %692 = vmatpush2.msra.mxu0 0.0
  %693 = vmatprep.subr.mxu0 0.0
  %694 = vmatpush2.msra.mxu0 0.0
  %695 = vmatprep.subr.mxu0 0.0
  %696 = vmatpush2.msra.mxu0 0.0
  %697 = vmatprep.subr.mxu0 0.0
  %698 = vmatpush2.msra.mxu0 0.0
  %699 = vmatprep.subr.mxu0 0.0
  %700 = vmatpush2.msra.mxu0 0.0
  %701 = vmatprep.subr.mxu0 0.0
  %702 = vmatpush2.msra.mxu0 0.0
  %703 = vmatprep.subr.mxu0 0.0
  %704 = vmatpush2.msra.mxu0 0.0
  %705 = vmatprep.subr.mxu0 0.0
  %706 = vmatpush2.msra.mxu0 0.0
  %707 = vmatprep.subr.mxu0 0.0
  %708 = vmatpush2.msra.mxu0 0.0
  %709 = vmatprep.subr.mxu0 0.0
  %710 = vmatpush2.msra.mxu0 0.0
  %711 = vmatprep.subr.mxu0 0.0
  %712 = vmatpush2.msra.mxu0 0.0
  %713 = vmatprep.subr.mxu0 0.0
  %714 = vmatpush2.msra.mxu0 0.0
  %715 = vmatprep.subr.mxu0 0.0
  %716 = vmatpush2.msra.mxu0 0.0
  %717 = vmatprep.mubr.f32.mxu0 0.0
  %718 = vmatmul.mubr.f32.gmra.mxu0 %v651
  %v719 = vpop.f32.mrf.mxu0
  %v720 = vadd.f32 %v645, %v719
  %v721 = vpop.f32.mrf.mxu0
  %722 = vdwg.mxu0
  %v723 = vadd.f32 %v720, %v450
  %v724 = vsub.f32 0.0, %v723
  %v725 = vmul.f32 %v724, 1.442695
  %v726 = vpow.pop %v725
  %v727 = vadd.f32 %v726, 1.0
  %v728 = vrcp.pop %v727
  %v729 = vmul.f32 1.0, %v728
  %v730 = vtanh.pop %v723
  %v731 = vmul.f32 %v729, %v470
  %733 = vrot.lane.b32.xlu0 %v730, 64
  %v734 = vpop.permute.xlu0 %733
  %v736 = vmul.f32 %v729, %v734
  %738 = vrot.lane.b32.xlu0 %v736, 32
  %v739 = vpop.permute.xlu0 %738
  %v741 = vadd.f32 %v731, %v739
  %v742 = vtanh.pop %v741
  %744 = vrot.lane.b32.xlu0 %v742, 64
  %v745 = vpop.permute.xlu0 %744
  %v747 = vmul.f32 %v729, %v745
  %v748 = vld [vmem:[#allocation2 + $0x10] sm:$0xff]
  %749 = vmatprep.subr.mxu0 0.0
  %750 = vmatpush1.msra.mxu0 0.0
  %751 = vmatprep.subr.mxu0 0.0
  %752 = vmatpush1.msra.mxu0 0.0
  %753 = vmatprep.subr.mxu0 0.0
  %754 = vmatpush1.msra.mxu0 0.0
  %755 = vmatprep.subr.mxu0 0.0
  %756 = vmatpush1.msra.mxu0 0.0
  %757 = vmatprep.subr.mxu0 0.0
  %758 = vmatpush1.msra.mxu0 0.0
  %759 = vmatprep.subr.mxu0 0.0
  %760 = vmatpush1.msra.mxu0 0.0
  %761 = vmatprep.subr.mxu0 0.0
  %762 = vmatpush1.msra.mxu0 0.0
  %763 = vmatprep.subr.mxu0 0.0
  %764 = vmatpush1.msra.mxu0 0.0
  %765 = vmatprep.subr.mxu0 0.0
  %766 = vmatpush1.msra.mxu0 0.0
  %767 = vmatprep.subr.mxu0 0.0
  %768 = vmatpush1.msra.mxu0 0.0
  %769 = vmatprep.subr.mxu0 0.0
  %770 = vmatpush1.msra.mxu0 0.0
  %771 = vmatprep.subr.mxu0 0.0
  %772 = vmatpush1.msra.mxu0 0.0
  %773 = vmatprep.subr.mxu0 0.0
  %774 = vmatpush1.msra.mxu0 %v43
  %775 = vmatprep.subr.mxu0 0.0
  %776 = vmatpush1.msra.mxu0 %v42
  %777 = vmatprep.subr.mxu0 0.0
  %778 = vmatpush1.msra.mxu0 %v41
  %779 = vmatprep.subr.mxu0 0.0
  %780 = vmatpush1.msra.mxu0 %v40
  %781 = vmatprep.subr.mxu0 0.0
  %782 = vmatpush2.msra.mxu0 0.0
  %783 = vmatprep.subr.mxu0 0.0
  %784 = vmatpush2.msra.mxu0 0.0
  %785 = vmatprep.subr.mxu0 0.0
  %786 = vmatpush2.msra.mxu0 0.0
  %787 = vmatprep.subr.mxu0 0.0
  %788 = vmatpush2.msra.mxu0 0.0
  %789 = vmatprep.subr.mxu0 0.0
  %790 = vmatpush2.msra.mxu0 0.0
  %791 = vmatprep.subr.mxu0 0.0
  %792 = vmatpush2.msra.mxu0 0.0
  %793 = vmatprep.subr.mxu0 0.0
  %794 = vmatpush2.msra.mxu0 0.0
  %795 = vmatprep.subr.mxu0 0.0
  %796 = vmatpush2.msra.mxu0 0.0
  %797 = vmatprep.subr.mxu0 0.0
  %798 = vmatpush2.msra.mxu0 0.0
  %799 = vmatprep.subr.mxu0 0.0
  %800 = vmatpush2.msra.mxu0 0.0
  %801 = vmatprep.subr.mxu0 0.0
  %802 = vmatpush2.msra.mxu0 0.0
  %803 = vmatprep.subr.mxu0 0.0
  %804 = vmatpush2.msra.mxu0 0.0
  %805 = vmatprep.subr.mxu0 0.0
  %806 = vmatpush2.msra.mxu0 0.0
  %807 = vmatprep.subr.mxu0 0.0
  %808 = vmatpush2.msra.mxu0 0.0
  %809 = vmatprep.subr.mxu0 0.0
  %810 = vmatpush2.msra.mxu0 0.0
  %811 = vmatprep.subr.mxu0 0.0
  %812 = vmatpush2.msra.mxu0 0.0
  %813 = vmatprep.mubr.f32.mxu0 0.0
  %814 = vmatmul.mubr.f32.gmra.mxu0 %v651
  %v815 = vpop.f32.mrf.mxu0
  %v816 = vadd.f32 0.0, %v815
  %v817 = vpop.f32.mrf.mxu0
  %818 = vdwg.mxu0
  %v819 = vadd.f32 %v748, %v816
  %v820 = vsub.f32 0.0, %v819
  %v821 = vmul.f32 %v820, 1.442695
  %v822 = vpow.pop %v821
  %v823 = vadd.f32 %v822, 1.0
  %v824 = vrcp.pop %v823
  %v825 = vmul.f32 1.0, %v824
  %v826 = vtanh.pop %v819
  %v827 = vmul.f32 %v825, %v566
  %829 = vrot.lane.b32.xlu0 %v826, 64
  %v830 = vpop.permute.xlu0 %829
  %v832 = vmul.f32 %v825, %v830
  %834 = vrot.lane.b32.xlu0 %v832, 32
  %v835 = vpop.permute.xlu0 %834
  %v837 = vadd.f32 %v827, %v835
  %v838 = vtanh.pop %v837
  %840 = vrot.lane.b32.xlu0 %v838, 64
  %v841 = vpop.permute.xlu0 %840
  %v843 = vmul.f32 %v825, %v841
  %845 = vrot.lane.b32.xlu0 %v747, 32
  %v846 = vpop.permute.xlu0 %845
  %v847 = vsel %vm64, %v846, 0
  %849 = vmatprep.subr.mxu0 0.0
  %850 = vmatpush1.msra.mxu0 0.0
  %851 = vmatprep.subr.mxu0 0.0
  %852 = vmatpush1.msra.mxu0 0.0
  %853 = vmatprep.subr.mxu0 0.0
  %854 = vmatpush1.msra.mxu0 0.0
  %855 = vmatprep.subr.mxu0 0.0
  %856 = vmatpush1.msra.mxu0 0.0
  %857 = vmatprep.subr.mxu0 0.0
  %858 = vmatpush1.msra.mxu0 0.0
  %859 = vmatprep.subr.mxu0 0.0
  %860 = vmatpush1.msra.mxu0 0.0
  %861 = vmatprep.subr.mxu0 0.0
  %862 = vmatpush1.msra.mxu0 0.0
  %863 = vmatprep.subr.mxu0 0.0
  %864 = vmatpush1.msra.mxu0 0.0
  %865 = vmatprep.subr.mxu0 0.0
  %866 = vmatpush1.msra.mxu0 0.0
  %867 = vmatprep.subr.mxu0 0.0
  %868 = vmatpush1.msra.mxu0 0.0
  %869 = vmatprep.subr.mxu0 0.0
  %870 = vmatpush1.msra.mxu0 0.0
  %871 = vmatprep.subr.mxu0 0.0
  %872 = vmatpush1.msra.mxu0 0.0
  %873 = vmatprep.subr.mxu0 0.0
  %874 = vmatpush1.msra.mxu0 %v47
  %875 = vmatprep.subr.mxu0 0.0
  %876 = vmatpush1.msra.mxu0 %v46
  %877 = vmatprep.subr.mxu0 0.0
  %878 = vmatpush1.msra.mxu0 %v45
  %879 = vmatprep.subr.mxu0 0.0
  %880 = vmatpush1.msra.mxu0 %v44
  %881 = vmatprep.subr.mxu0 0.0
  %882 = vmatpush2.msra.mxu0 0.0
  %883 = vmatprep.subr.mxu0 0.0
  %884 = vmatpush2.msra.mxu0 0.0
  %885 = vmatprep.subr.mxu0 0.0
  %886 = vmatpush2.msra.mxu0 0.0
  %887 = vmatprep.subr.mxu0 0.0
  %888 = vmatpush2.msra.mxu0 0.0
  %889 = vmatprep.subr.mxu0 0.0
  %890 = vmatpush2.msra.mxu0 0.0
  %891 = vmatprep.subr.mxu0 0.0
  %892 = vmatpush2.msra.mxu0 0.0
  %893 = vmatprep.subr.mxu0 0.0
  %894 = vmatpush2.msra.mxu0 0.0
  %895 = vmatprep.subr.mxu0 0.0
  %896 = vmatpush2.msra.mxu0 0.0
  %897 = vmatprep.subr.mxu0 0.0
  %898 = vmatpush2.msra.mxu0 0.0
  %899 = vmatprep.subr.mxu0 0.0
  %900 = vmatpush2.msra.mxu0 0.0
  %901 = vmatprep.subr.mxu0 0.0
  %902 = vmatpush2.msra.mxu0 0.0
  %903 = vmatprep.subr.mxu0 0.0
  %904 = vmatpush2.msra.mxu0 0.0
  %905 = vmatprep.subr.mxu0 0.0
  %906 = vmatpush2.msra.mxu0 0.0
  %907 = vmatprep.subr.mxu0 0.0
  %908 = vmatpush2.msra.mxu0 0.0
  %909 = vmatprep.subr.mxu0 0.0
  %910 = vmatpush2.msra.mxu0 0.0
  %911 = vmatprep.subr.mxu0 0.0
  %912 = vmatpush2.msra.mxu0 0.0
  %913 = vmatprep.mubr.f32.mxu0 0.0
  %914 = vmatmul.mubr.f32.gmra.mxu0 %v847
  %v915 = vpop.f32.mrf.mxu0
  %v916 = vadd.f32 0.0, %v915
  %v917 = vpop.f32.mrf.mxu0
  %918 = vdwg.mxu0
  %920 = vrot.lane.b32.xlu0 %v843, 32
  %v921 = vpop.permute.xlu0 %920
  %v922 = vsel %vm64, %v921, 0
  %924 = vmatprep.subr.mxu0 0.0
  %925 = vmatpush1.msra.mxu0 0.0
  %926 = vmatprep.subr.mxu0 0.0
  %927 = vmatpush1.msra.mxu0 0.0
  %928 = vmatprep.subr.mxu0 0.0
  %929 = vmatpush1.msra.mxu0 0.0
  %930 = vmatprep.subr.mxu0 0.0
  %931 = vmatpush1.msra.mxu0 0.0
  %932 = vmatprep.subr.mxu0 0.0
  %933 = vmatpush1.msra.mxu0 0.0
  %934 = vmatprep.subr.mxu0 0.0
  %935 = vmatpush1.msra.mxu0 0.0
  %936 = vmatprep.subr.mxu0 0.0
  %937 = vmatpush1.msra.mxu0 0.0
  %938 = vmatprep.subr.mxu0 0.0
  %939 = vmatpush1.msra.mxu0 0.0
  %940 = vmatprep.subr.mxu0 0.0
  %941 = vmatpush1.msra.mxu0 0.0
  %942 = vmatprep.subr.mxu0 0.0
  %943 = vmatpush1.msra.mxu0 0.0
  %944 = vmatprep.subr.mxu0 0.0
  %945 = vmatpush1.msra.mxu0 0.0
  %946 = vmatprep.subr.mxu0 0.0
  %947 = vmatpush1.msra.mxu0 0.0
  %948 = vmatprep.subr.mxu0 0.0
  %949 = vmatpush1.msra.mxu0 %v39
  %950 = vmatprep.subr.mxu0 0.0
  %951 = vmatpush1.msra.mxu0 %v38
  %952 = vmatprep.subr.mxu0 0.0
  %953 = vmatpush1.msra.mxu0 %v37
  %954 = vmatprep.subr.mxu0 0.0
  %955 = vmatpush1.msra.mxu0 %v36
  %956 = vmatprep.subr.mxu0 0.0
  %957 = vmatpush2.msra.mxu0 0.0
  %958 = vmatprep.subr.mxu0 0.0
  %959 = vmatpush2.msra.mxu0 0.0
  %960 = vmatprep.subr.mxu0 0.0
  %961 = vmatpush2.msra.mxu0 0.0
  %962 = vmatprep.subr.mxu0 0.0
  %963 = vmatpush2.msra.mxu0 0.0
  %964 = vmatprep.subr.mxu0 0.0
  %965 = vmatpush2.msra.mxu0 0.0
  %966 = vmatprep.subr.mxu0 0.0
  %967 = vmatpush2.msra.mxu0 0.0
  %968 = vmatprep.subr.mxu0 0.0
  %969 = vmatpush2.msra.mxu0 0.0
  %970 = vmatprep.subr.mxu0 0.0
  %971 = vmatpush2.msra.mxu0 0.0
  %972 = vmatprep.subr.mxu0 0.0
  %973 = vmatpush2.msra.mxu0 0.0
  %974 = vmatprep.subr.mxu0 0.0
  %975 = vmatpush2.msra.mxu0 0.0
  %976 = vmatprep.subr.mxu0 0.0
  %977 = vmatpush2.msra.mxu0 0.0
  %978 = vmatprep.subr.mxu0 0.0
  %979 = vmatpush2.msra.mxu0 0.0
  %980 = vmatprep.subr.mxu0 0.0
  %981 = vmatpush2.msra.mxu0 0.0
  %982 = vmatprep.subr.mxu0 0.0
  %983 = vmatpush2.msra.mxu0 0.0
  %984 = vmatprep.subr.mxu0 0.0
  %985 = vmatpush2.msra.mxu0 0.0
  %986 = vmatprep.subr.mxu0 0.0
  %987 = vmatpush2.msra.mxu0 0.0
  %988 = vmatprep.mubr.f32.mxu0 0.0
  %989 = vmatmul.mubr.f32.gmra.mxu0 %v922
  %v990 = vpop.f32.mrf.mxu0
  %v991 = vadd.f32 %v916, %v990
  %v992 = vpop.f32.mrf.mxu0
  %993 = vdwg.mxu0
  %v994 = vadd.f32 %v991, %v450
  %v995 = vsub.f32 0.0, %v994
  %v996 = vmul.f32 %v995, 1.442695
  %v997 = vpow.pop %v996
  %v998 = vadd.f32 %v997, 1.0
  %v999 = vrcp.pop %v998
  %v1000 = vmul.f32 1.0, %v999
  %v1001 = vtanh.pop %v994
  %v1002 = vmul.f32 %v1000, %v741
  %1004 = vrot.lane.b32.xlu0 %v1001, 64
  %v1005 = vpop.permute.xlu0 %1004
  %v1007 = vmul.f32 %v1000, %v1005
  %1009 = vrot.lane.b32.xlu0 %v1007, 32
  %v1010 = vpop.permute.xlu0 %1009
  %v1012 = vadd.f32 %v1002, %v1010
  %v1013 = vtanh.pop %v1012
  %1015 = vrot.lane.b32.xlu0 %v1013, 64
  %v1016 = vpop.permute.xlu0 %1015
  %v1018 = vmul.f32 %v1000, %v1016
  %v1019 = vld [vmem:[#allocation2 + $0x18] sm:$0xff]
  %1020 = vmatprep.subr.mxu0 0.0
  %1021 = vmatpush1.msra.mxu0 0.0
  %1022 = vmatprep.subr.mxu0 0.0
  %1023 = vmatpush1.msra.mxu0 0.0
  %1024 = vmatprep.subr.mxu0 0.0
  %1025 = vmatpush1.msra.mxu0 0.0
  %1026 = vmatprep.subr.mxu0 0.0
  %1027 = vmatpush1.msra.mxu0 0.0
  %1028 = vmatprep.subr.mxu0 0.0
  %1029 = vmatpush1.msra.mxu0 0.0
  %1030 = vmatprep.subr.mxu0 0.0
  %1031 = vmatpush1.msra.mxu0 0.0
  %1032 = vmatprep.subr.mxu0 0.0
  %1033 = vmatpush1.msra.mxu0 0.0
  %1034 = vmatprep.subr.mxu0 0.0
  %1035 = vmatpush1.msra.mxu0 0.0
  %1036 = vmatprep.subr.mxu0 0.0
  %1037 = vmatpush1.msra.mxu0 0.0
  %1038 = vmatprep.subr.mxu0 0.0
  %1039 = vmatpush1.msra.mxu0 0.0
  %1040 = vmatprep.subr.mxu0 0.0
  %1041 = vmatpush1.msra.mxu0 0.0
  %1042 = vmatprep.subr.mxu0 0.0
  %1043 = vmatpush1.msra.mxu0 0.0
  %1044 = vmatprep.subr.mxu0 0.0
  %1045 = vmatpush1.msra.mxu0 %v43
  %1046 = vmatprep.subr.mxu0 0.0
  %1047 = vmatpush1.msra.mxu0 %v42
  %1048 = vmatprep.subr.mxu0 0.0
  %1049 = vmatpush1.msra.mxu0 %v41
  %1050 = vmatprep.subr.mxu0 0.0
  %1051 = vmatpush1.msra.mxu0 %v40
  %1052 = vmatprep.subr.mxu0 0.0
  %1053 = vmatpush2.msra.mxu0 0.0
  %1054 = vmatprep.subr.mxu0 0.0
  %1055 = vmatpush2.msra.mxu0 0.0
  %1056 = vmatprep.subr.mxu0 0.0
  %1057 = vmatpush2.msra.mxu0 0.0
  %1058 = vmatprep.subr.mxu0 0.0
  %1059 = vmatpush2.msra.mxu0 0.0
  %1060 = vmatprep.subr.mxu0 0.0
  %1061 = vmatpush2.msra.mxu0 0.0
  %1062 = vmatprep.subr.mxu0 0.0
  %1063 = vmatpush2.msra.mxu0 0.0
  %1064 = vmatprep.subr.mxu0 0.0
  %1065 = vmatpush2.msra.mxu0 0.0
  %1066 = vmatprep.subr.mxu0 0.0
  %1067 = vmatpush2.msra.mxu0 0.0
  %1068 = vmatprep.subr.mxu0 0.0
  %1069 = vmatpush2.msra.mxu0 0.0
  %1070 = vmatprep.subr.mxu0 0.0
  %1071 = vmatpush2.msra.mxu0 0.0
  %1072 = vmatprep.subr.mxu0 0.0
  %1073 = vmatpush2.msra.mxu0 0.0
  %1074 = vmatprep.subr.mxu0 0.0
  %1075 = vmatpush2.msra.mxu0 0.0
  %1076 = vmatprep.subr.mxu0 0.0
  %1077 = vmatpush2.msra.mxu0 0.0
  %1078 = vmatprep.subr.mxu0 0.0
  %1079 = vmatpush2.msra.mxu0 0.0
  %1080 = vmatprep.subr.mxu0 0.0
  %1081 = vmatpush2.msra.mxu0 0.0
  %1082 = vmatprep.subr.mxu0 0.0
  %1083 = vmatpush2.msra.mxu0 0.0
  %1084 = vmatprep.mubr.f32.mxu0 0.0
  %1085 = vmatmul.mubr.f32.gmra.mxu0 %v922
  %v1086 = vpop.f32.mrf.mxu0
  %v1087 = vadd.f32 0.0, %v1086
  %v1088 = vpop.f32.mrf.mxu0
  %1089 = vdwg.mxu0
  %v1090 = vadd.f32 %v1019, %v1087
  %v1091 = vsub.f32 0.0, %v1090
  %v1092 = vmul.f32 %v1091, 1.442695
  %v1093 = vpow.pop %v1092
  %v1094 = vadd.f32 %v1093, 1.0
  %v1095 = vrcp.pop %v1094
  %v1096 = vmul.f32 1.0, %v1095
  %v1097 = vtanh.pop %v1090
  %v1098 = vmul.f32 %v1096, %v837
  %1100 = vrot.lane.b32.xlu0 %v1097, 64
  %v1101 = vpop.permute.xlu0 %1100
  %v1103 = vmul.f32 %v1096, %v1101
  %1105 = vrot.lane.b32.xlu0 %v1103, 32
  %v1106 = vpop.permute.xlu0 %1105
  %v1108 = vadd.f32 %v1098, %v1106
  %v1109 = vtanh.pop %v1108
  %1111 = vrot.lane.b32.xlu0 %v1109, 64
  %v1112 = vpop.permute.xlu0 %1111
  %v1114 = vmul.f32 %v1096, %v1112
  %1116 = vrot.lane.b32.xlu0 %v1018, 32
  %v1117 = vpop.permute.xlu0 %1116
  %v1118 = vsel %vm64, %v1117, 0
  %1120 = vmatprep.subr.mxu0 0.0
  %1121 = vmatpush1.msra.mxu0 0.0
  %1122 = vmatprep.subr.mxu0 0.0
  %1123 = vmatpush1.msra.mxu0 0.0
  %1124 = vmatprep.subr.mxu0 0.0
  %1125 = vmatpush1.msra.mxu0 0.0
  %1126 = vmatprep.subr.mxu0 0.0
  %1127 = vmatpush1.msra.mxu0 0.0
  %1128 = vmatprep.subr.mxu0 0.0
  %1129 = vmatpush1.msra.mxu0 0.0
  %1130 = vmatprep.subr.mxu0 0.0
  %1131 = vmatpush1.msra.mxu0 0.0
  %1132 = vmatprep.subr.mxu0 0.0
  %1133 = vmatpush1.msra.mxu0 0.0
  %1134 = vmatprep.subr.mxu0 0.0
  %1135 = vmatpush1.msra.mxu0 0.0
  %1136 = vmatprep.subr.mxu0 0.0
  %1137 = vmatpush1.msra.mxu0 0.0
  %1138 = vmatprep.subr.mxu0 0.0
  %1139 = vmatpush1.msra.mxu0 0.0
  %1140 = vmatprep.subr.mxu0 0.0
  %1141 = vmatpush1.msra.mxu0 0.0
  %1142 = vmatprep.subr.mxu0 0.0
  %1143 = vmatpush1.msra.mxu0 0.0
  %1144 = vmatprep.subr.mxu0 0.0
  %1145 = vmatpush1.msra.mxu0 %v47
  %1146 = vmatprep.subr.mxu0 0.0
  %1147 = vmatpush1.msra.mxu0 %v46
  %1148 = vmatprep.subr.mxu0 0.0
  %1149 = vmatpush1.msra.mxu0 %v45
  %1150 = vmatprep.subr.mxu0 0.0
  %1151 = vmatpush1.msra.mxu0 %v44
  %1152 = vmatprep.subr.mxu0 0.0
  %1153 = vmatpush2.msra.mxu0 0.0
  %1154 = vmatprep.subr.mxu0 0.0
  %1155 = vmatpush2.msra.mxu0 0.0
  %1156 = vmatprep.subr.mxu0 0.0
  %1157 = vmatpush2.msra.mxu0 0.0
  %1158 = vmatprep.subr.mxu0 0.0
  %1159 = vmatpush2.msra.mxu0 0.0
  %1160 = vmatprep.subr.mxu0 0.0
  %1161 = vmatpush2.msra.mxu0 0.0
  %1162 = vmatprep.subr.mxu0 0.0
  %1163 = vmatpush2.msra.mxu0 0.0
  %1164 = vmatprep.subr.mxu0 0.0
  %1165 = vmatpush2.msra.mxu0 0.0
  %1166 = vmatprep.subr.mxu0 0.0
  %1167 = vmatpush2.msra.mxu0 0.0
  %1168 = vmatprep.subr.mxu0 0.0
  %1169 = vmatpush2.msra.mxu0 0.0
  %1170 = vmatprep.subr.mxu0 0.0
  %1171 = vmatpush2.msra.mxu0 0.0
  %1172 = vmatprep.subr.mxu0 0.0
  %1173 = vmatpush2.msra.mxu0 0.0
  %1174 = vmatprep.subr.mxu0 0.0
  %1175 = vmatpush2.msra.mxu0 0.0
  %1176 = vmatprep.subr.mxu0 0.0
  %1177 = vmatpush2.msra.mxu0 0.0
  %1178 = vmatprep.subr.mxu0 0.0
  %1179 = vmatpush2.msra.mxu0 0.0
  %1180 = vmatprep.subr.mxu0 0.0
  %1181 = vmatpush2.msra.mxu0 0.0
  %1182 = vmatprep.subr.mxu0 0.0
  %1183 = vmatpush2.msra.mxu0 0.0
  %1184 = vmatprep.mubr.f32.mxu0 0.0
  %1185 = vmatmul.mubr.f32.gmra.mxu0 %v1118
  %v1186 = vpop.f32.mrf.mxu0
  %v1187 = vadd.f32 0.0, %v1186
  %v1188 = vpop.f32.mrf.mxu0
  %1189 = vdwg.mxu0
  %1191 = vrot.lane.b32.xlu0 %v1114, 32
  %v1192 = vpop.permute.xlu0 %1191
  %v1193 = vsel %vm64, %v1192, 0
  %1195 = vmatprep.subr.mxu0 0.0
  %1196 = vmatpush1.msra.mxu0 0.0
  %1197 = vmatprep.subr.mxu0 0.0
  %1198 = vmatpush1.msra.mxu0 0.0
  %1199 = vmatprep.subr.mxu0 0.0
  %1200 = vmatpush1.msra.mxu0 0.0
  %1201 = vmatprep.subr.mxu0 0.0
  %1202 = vmatpush1.msra.mxu0 0.0
  %1203 = vmatprep.subr.mxu0 0.0
  %1204 = vmatpush1.msra.mxu0 0.0
  %1205 = vmatprep.subr.mxu0 0.0
  %1206 = vmatpush1.msra.mxu0 0.0
  %1207 = vmatprep.subr.mxu0 0.0
  %1208 = vmatpush1.msra.mxu0 0.0
  %1209 = vmatprep.subr.mxu0 0.0
  %1210 = vmatpush1.msra.mxu0 0.0
  %1211 = vmatprep.subr.mxu0 0.0
  %1212 = vmatpush1.msra.mxu0 0.0
  %1213 = vmatprep.subr.mxu0 0.0
  %1214 = vmatpush1.msra.mxu0 0.0
  %1215 = vmatprep.subr.mxu0 0.0
  %1216 = vmatpush1.msra.mxu0 0.0
  %1217 = vmatprep.subr.mxu0 0.0
  %1218 = vmatpush1.msra.mxu0 0.0
  %1219 = vmatprep.subr.mxu0 0.0
  %1220 = vmatpush1.msra.mxu0 %v39
  %1221 = vmatprep.subr.mxu0 0.0
  %1222 = vmatpush1.msra.mxu0 %v38
  %1223 = vmatprep.subr.mxu0 0.0
  %1224 = vmatpush1.msra.mxu0 %v37
  %1225 = vmatprep.subr.mxu0 0.0
  %1226 = vmatpush1.msra.mxu0 %v36
  %1227 = vmatprep.subr.mxu0 0.0
  %1228 = vmatpush2.msra.mxu0 0.0
  %1229 = vmatprep.subr.mxu0 0.0
  %1230 = vmatpush2.msra.mxu0 0.0
  %1231 = vmatprep.subr.mxu0 0.0
  %1232 = vmatpush2.msra.mxu0 0.0
  %1233 = vmatprep.subr.mxu0 0.0
  %1234 = vmatpush2.msra.mxu0 0.0
  %1235 = vmatprep.subr.mxu0 0.0
  %1236 = vmatpush2.msra.mxu0 0.0
  %1237 = vmatprep.subr.mxu0 0.0
  %1238 = vmatpush2.msra.mxu0 0.0
  %1239 = vmatprep.subr.mxu0 0.0
  %1240 = vmatpush2.msra.mxu0 0.0
  %1241 = vmatprep.subr.mxu0 0.0
  %1242 = vmatpush2.msra.mxu0 0.0
  %1243 = vmatprep.subr.mxu0 0.0
  %1244 = vmatpush2.msra.mxu0 0.0
  %1245 = vmatprep.subr.mxu0 0.0
  %1246 = vmatpush2.msra.mxu0 0.0
  %1247 = vmatprep.subr.mxu0 0.0
  %1248 = vmatpush2.msra.mxu0 0.0
  %1249 = vmatprep.subr.mxu0 0.0
  %1250 = vmatpush2.msra.mxu0 0.0
  %1251 = vmatprep.subr.mxu0 0.0
  %1252 = vmatpush2.msra.mxu0 0.0
  %1253 = vmatprep.subr.mxu0 0.0
  %1254 = vmatpush2.msra.mxu0 0.0
  %1255 = vmatprep.subr.mxu0 0.0
  %1256 = vmatpush2.msra.mxu0 0.0
  %1257 = vmatprep.subr.mxu0 0.0
  %1258 = vmatpush2.msra.mxu0 0.0
  %1259 = vmatprep.mubr.f32.mxu0 0.0
  %1260 = vmatmul.mubr.f32.gmra.mxu0 %v1193
  %v1261 = vpop.f32.mrf.mxu0
  %v1262 = vadd.f32 %v1187, %v1261
  %v1263 = vpop.f32.mrf.mxu0
  %1264 = vdwg.mxu0
  %v1265 = vadd.f32 %v1262, %v450
  %v1266 = vsub.f32 0.0, %v1265
  %v1267 = vmul.f32 %v1266, 1.442695
  %v1268 = vpow.pop %v1267
  %v1269 = vadd.f32 %v1268, 1.0
  %v1270 = vrcp.pop %v1269
  %v1271 = vmul.f32 1.0, %v1270
  %v1272 = vtanh.pop %v1265
  %v1273 = vmul.f32 %v1271, %v1012
  %1275 = vrot.lane.b32.xlu0 %v1272, 64
  %v1276 = vpop.permute.xlu0 %1275
  %v1278 = vmul.f32 %v1271, %v1276
  %1280 = vrot.lane.b32.xlu0 %v1278, 32
  %v1281 = vpop.permute.xlu0 %1280
  %v1283 = vadd.f32 %v1273, %v1281
  %v1284 = vtanh.pop %v1283
  %1286 = vrot.lane.b32.xlu0 %v1284, 64
  %v1287 = vpop.permute.xlu0 %1286
  %v1289 = vmul.f32 %v1271, %v1287
  %v1290 = vld [vmem:[#allocation2 + $0x20] sm:$0xff]
  %1291 = vmatprep.subr.mxu0 0.0
  %1292 = vmatpush1.msra.mxu0 0.0
  %1293 = vmatprep.subr.mxu0 0.0
  %1294 = vmatpush1.msra.mxu0 0.0
  %1295 = vmatprep.subr.mxu0 0.0
  %1296 = vmatpush1.msra.mxu0 0.0
  %1297 = vmatprep.subr.mxu0 0.0
  %1298 = vmatpush1.msra.mxu0 0.0
  %1299 = vmatprep.subr.mxu0 0.0
  %1300 = vmatpush1.msra.mxu0 0.0
  %1301 = vmatprep.subr.mxu0 0.0
  %1302 = vmatpush1.msra.mxu0 0.0
  %1303 = vmatprep.subr.mxu0 0.0
  %1304 = vmatpush1.msra.mxu0 0.0
  %1305 = vmatprep.subr.mxu0 0.0
  %1306 = vmatpush1.msra.mxu0 0.0
  %1307 = vmatprep.subr.mxu0 0.0
  %1308 = vmatpush1.msra.mxu0 0.0
  %1309 = vmatprep.subr.mxu0 0.0
  %1310 = vmatpush1.msra.mxu0 0.0
  %1311 = vmatprep.subr.mxu0 0.0
  %1312 = vmatpush1.msra.mxu0 0.0
  %1313 = vmatprep.subr.mxu0 0.0
  %1314 = vmatpush1.msra.mxu0 0.0
  %1315 = vmatprep.subr.mxu0 0.0
  %1316 = vmatpush1.msra.mxu0 %v43
  %1317 = vmatprep.subr.mxu0 0.0
  %1318 = vmatpush1.msra.mxu0 %v42
  %1319 = vmatprep.subr.mxu0 0.0
  %1320 = vmatpush1.msra.mxu0 %v41
  %1321 = vmatprep.subr.mxu0 0.0
  %1322 = vmatpush1.msra.mxu0 %v40
  %1323 = vmatprep.subr.mxu0 0.0
  %1324 = vmatpush2.msra.mxu0 0.0
  %1325 = vmatprep.subr.mxu0 0.0
  %1326 = vmatpush2.msra.mxu0 0.0
  %1327 = vmatprep.subr.mxu0 0.0
  %1328 = vmatpush2.msra.mxu0 0.0
  %1329 = vmatprep.subr.mxu0 0.0
  %1330 = vmatpush2.msra.mxu0 0.0
  %1331 = vmatprep.subr.mxu0 0.0
  %1332 = vmatpush2.msra.mxu0 0.0
  %1333 = vmatprep.subr.mxu0 0.0
  %1334 = vmatpush2.msra.mxu0 0.0
  %1335 = vmatprep.subr.mxu0 0.0
  %1336 = vmatpush2.msra.mxu0 0.0
  %1337 = vmatprep.subr.mxu0 0.0
  %1338 = vmatpush2.msra.mxu0 0.0
  %1339 = vmatprep.subr.mxu0 0.0
  %1340 = vmatpush2.msra.mxu0 0.0
  %1341 = vmatprep.subr.mxu0 0.0
  %1342 = vmatpush2.msra.mxu0 0.0
  %1343 = vmatprep.subr.mxu0 0.0
  %1344 = vmatpush2.msra.mxu0 0.0
  %1345 = vmatprep.subr.mxu0 0.0
  %1346 = vmatpush2.msra.mxu0 0.0
  %1347 = vmatprep.subr.mxu0 0.0
  %1348 = vmatpush2.msra.mxu0 0.0
  %1349 = vmatprep.subr.mxu0 0.0
  %1350 = vmatpush2.msra.mxu0 0.0
  %1351 = vmatprep.subr.mxu0 0.0
  %1352 = vmatpush2.msra.mxu0 0.0
  %1353 = vmatprep.subr.mxu0 0.0
  %1354 = vmatpush2.msra.mxu0 0.0
  %1355 = vmatprep.mubr.f32.mxu0 0.0
  %1356 = vmatmul.mubr.f32.gmra.mxu0 %v1193
  %v1357 = vpop.f32.mrf.mxu0
  %v1358 = vadd.f32 0.0, %v1357
  %v1359 = vpop.f32.mrf.mxu0
  %1360 = vdwg.mxu0
  %v1361 = vadd.f32 %v1290, %v1358
  %v1362 = vsub.f32 0.0, %v1361
  %v1363 = vmul.f32 %v1362, 1.442695
  %v1364 = vpow.pop %v1363
  %v1365 = vadd.f32 %v1364, 1.0
  %v1366 = vrcp.pop %v1365
  %v1367 = vmul.f32 1.0, %v1366
  %v1368 = vtanh.pop %v1361
  %v1369 = vmul.f32 %v1367, %v1108
  %1371 = vrot.lane.b32.xlu0 %v1368, 64
  %v1372 = vpop.permute.xlu0 %1371
  %v1374 = vmul.f32 %v1367, %v1372
  %1376 = vrot.lane.b32.xlu0 %v1374, 32
  %v1377 = vpop.permute.xlu0 %1376
  %v1379 = vadd.f32 %v1369, %v1377
  %v1380 = vtanh.pop %v1379
  %1382 = vrot.lane.b32.xlu0 %v1380, 64
  %v1383 = vpop.permute.xlu0 %1382
  %v1385 = vmul.f32 %v1367, %v1383
  %1387 = vrot.lane.b32.xlu0 %v1289, 32
  %v1388 = vpop.permute.xlu0 %1387
  %v1389 = vsel %vm64, %v1388, 0
  %1391 = vmatprep.subr.mxu0 0.0
  %1392 = vmatpush1.msra.mxu0 0.0
  %1393 = vmatprep.subr.mxu0 0.0
  %1394 = vmatpush1.msra.mxu0 0.0
  %1395 = vmatprep.subr.mxu0 0.0
  %1396 = vmatpush1.msra.mxu0 0.0
  %1397 = vmatprep.subr.mxu0 0.0
  %1398 = vmatpush1.msra.mxu0 0.0
  %1399 = vmatprep.subr.mxu0 0.0
  %1400 = vmatpush1.msra.mxu0 0.0
  %1401 = vmatprep.subr.mxu0 0.0
  %1402 = vmatpush1.msra.mxu0 0.0
  %1403 = vmatprep.subr.mxu0 0.0
  %1404 = vmatpush1.msra.mxu0 0.0
  %1405 = vmatprep.subr.mxu0 0.0
  %1406 = vmatpush1.msra.mxu0 0.0
  %1407 = vmatprep.subr.mxu0 0.0
  %1408 = vmatpush1.msra.mxu0 0.0
  %1409 = vmatprep.subr.mxu0 0.0
  %1410 = vmatpush1.msra.mxu0 0.0
  %1411 = vmatprep.subr.mxu0 0.0
  %1412 = vmatpush1.msra.mxu0 0.0
  %1413 = vmatprep.subr.mxu0 0.0
  %1414 = vmatpush1.msra.mxu0 0.0
  %1415 = vmatprep.subr.mxu0 0.0
  %1416 = vmatpush1.msra.mxu0 %v47
  %1417 = vmatprep.subr.mxu0 0.0
  %1418 = vmatpush1.msra.mxu0 %v46
  %1419 = vmatprep.subr.mxu0 0.0
  %1420 = vmatpush1.msra.mxu0 %v45
  %1421 = vmatprep.subr.mxu0 0.0
  %1422 = vmatpush1.msra.mxu0 %v44
  %1423 = vmatprep.subr.mxu0 0.0
  %1424 = vmatpush2.msra.mxu0 0.0
  %1425 = vmatprep.subr.mxu0 0.0
  %1426 = vmatpush2.msra.mxu0 0.0
  %1427 = vmatprep.subr.mxu0 0.0
  %1428 = vmatpush2.msra.mxu0 0.0
  %1429 = vmatprep.subr.mxu0 0.0
  %1430 = vmatpush2.msra.mxu0 0.0
  %1431 = vmatprep.subr.mxu0 0.0
  %1432 = vmatpush2.msra.mxu0 0.0
  %1433 = vmatprep.subr.mxu0 0.0
  %1434 = vmatpush2.msra.mxu0 0.0
  %1435 = vmatprep.subr.mxu0 0.0
  %1436 = vmatpush2.msra.mxu0 0.0
  %1437 = vmatprep.subr.mxu0 0.0
  %1438 = vmatpush2.msra.mxu0 0.0
  %1439 = vmatprep.subr.mxu0 0.0
  %1440 = vmatpush2.msra.mxu0 0.0
  %1441 = vmatprep.subr.mxu0 0.0
  %1442 = vmatpush2.msra.mxu0 0.0
  %1443 = vmatprep.subr.mxu0 0.0
  %1444 = vmatpush2.msra.mxu0 0.0
  %1445 = vmatprep.subr.mxu0 0.0
  %1446 = vmatpush2.msra.mxu0 0.0
  %1447 = vmatprep.subr.mxu0 0.0
  %1448 = vmatpush2.msra.mxu0 0.0
  %1449 = vmatprep.subr.mxu0 0.0
  %1450 = vmatpush2.msra.mxu0 0.0
  %1451 = vmatprep.subr.mxu0 0.0
  %1452 = vmatpush2.msra.mxu0 0.0
  %1453 = vmatprep.subr.mxu0 0.0
  %1454 = vmatpush2.msra.mxu0 0.0
  %1455 = vmatprep.mubr.f32.mxu0 0.0
  %1456 = vmatmul.mubr.f32.gmra.mxu0 %v1389
  %v1457 = vpop.f32.mrf.mxu0
  %v1458 = vadd.f32 0.0, %v1457
  %v1459 = vpop.f32.mrf.mxu0
  %1460 = vdwg.mxu0
  %1462 = vrot.lane.b32.xlu0 %v1385, 32
  %v1463 = vpop.permute.xlu0 %1462
  %v1464 = vsel %vm64, %v1463, 0
  %1466 = vmatprep.subr.mxu0 0.0
  %1467 = vmatpush1.msra.mxu0 0.0
  %1468 = vmatprep.subr.mxu0 0.0
  %1469 = vmatpush1.msra.mxu0 0.0
  %1470 = vmatprep.subr.mxu0 0.0
  %1471 = vmatpush1.msra.mxu0 0.0
  %1472 = vmatprep.subr.mxu0 0.0
  %1473 = vmatpush1.msra.mxu0 0.0
  %1474 = vmatprep.subr.mxu0 0.0
  %1475 = vmatpush1.msra.mxu0 0.0
  %1476 = vmatprep.subr.mxu0 0.0
  %1477 = vmatpush1.msra.mxu0 0.0
  %1478 = vmatprep.subr.mxu0 0.0
  %1479 = vmatpush1.msra.mxu0 0.0
  %1480 = vmatprep.subr.mxu0 0.0
  %1481 = vmatpush1.msra.mxu0 0.0
  %1482 = vmatprep.subr.mxu0 0.0
  %1483 = vmatpush1.msra.mxu0 0.0
  %1484 = vmatprep.subr.mxu0 0.0
  %1485 = vmatpush1.msra.mxu0 0.0
  %1486 = vmatprep.subr.mxu0 0.0
  %1487 = vmatpush1.msra.mxu0 0.0
  %1488 = vmatprep.subr.mxu0 0.0
  %1489 = vmatpush1.msra.mxu0 0.0
  %1490 = vmatprep.subr.mxu0 0.0
  %1491 = vmatpush1.msra.mxu0 %v39
  %1492 = vmatprep.subr.mxu0 0.0
  %1493 = vmatpush1.msra.mxu0 %v38
  %1494 = vmatprep.subr.mxu0 0.0
  %1495 = vmatpush1.msra.mxu0 %v37
  %1496 = vmatprep.subr.mxu0 0.0
  %1497 = vmatpush1.msra.mxu0 %v36
  %1498 = vmatprep.subr.mxu0 0.0
  %1499 = vmatpush2.msra.mxu0 0.0
  %1500 = vmatprep.subr.mxu0 0.0
  %1501 = vmatpush2.msra.mxu0 0.0
  %1502 = vmatprep.subr.mxu0 0.0
  %1503 = vmatpush2.msra.mxu0 0.0
  %1504 = vmatprep.subr.mxu0 0.0
  %1505 = vmatpush2.msra.mxu0 0.0
  %1506 = vmatprep.subr.mxu0 0.0
  %1507 = vmatpush2.msra.mxu0 0.0
  %1508 = vmatprep.subr.mxu0 0.0
  %1509 = vmatpush2.msra.mxu0 0.0
  %1510 = vmatprep.subr.mxu0 0.0
  %1511 = vmatpush2.msra.mxu0 0.0
  %1512 = vmatprep.subr.mxu0 0.0
  %1513 = vmatpush2.msra.mxu0 0.0
  %1514 = vmatprep.subr.mxu0 0.0
  %1515 = vmatpush2.msra.mxu0 0.0
  %1516 = vmatprep.subr.mxu0 0.0
  %1517 = vmatpush2.msra.mxu0 0.0
  %1518 = vmatprep.subr.mxu0 0.0
  %1519 = vmatpush2.msra.mxu0 0.0
  %1520 = vmatprep.subr.mxu0 0.0
  %1521 = vmatpush2.msra.mxu0 0.0
  %1522 = vmatprep.subr.mxu0 0.0
  %1523 = vmatpush2.msra.mxu0 0.0
  %1524 = vmatprep.subr.mxu0 0.0
  %1525 = vmatpush2.msra.mxu0 0.0
  %1526 = vmatprep.subr.mxu0 0.0
  %1527 = vmatpush2.msra.mxu0 0.0
  %1528 = vmatprep.subr.mxu0 0.0
  %1529 = vmatpush2.msra.mxu0 0.0
  %1530 = vmatprep.mubr.f32.mxu0 0.0
  %1531 = vmatmul.mubr.f32.gmra.mxu0 %v1464
  %v1532 = vpop.f32.mrf.mxu0
  %v1533 = vadd.f32 %v1458, %v1532
  %v1534 = vpop.f32.mrf.mxu0
  %1535 = vdwg.mxu0
  %v1536 = vadd.f32 %v1533, %v450
  %v1537 = vsub.f32 0.0, %v1536
  %v1538 = vmul.f32 %v1537, 1.442695
  %v1539 = vpow.pop %v1538
  %v1540 = vadd.f32 %v1539, 1.0
  %v1541 = vrcp.pop %v1540
  %v1542 = vmul.f32 1.0, %v1541
  %v1543 = vtanh.pop %v1536
  %v1544 = vmul.f32 %v1542, %v1283
  %1546 = vrot.lane.b32.xlu0 %v1543, 64
  %v1547 = vpop.permute.xlu0 %1546
  %v1549 = vmul.f32 %v1542, %v1547
  %1551 = vrot.lane.b32.xlu0 %v1549, 32
  %v1552 = vpop.permute.xlu0 %1551
  %v1554 = vadd.f32 %v1544, %v1552
  %v1555 = vtanh.pop %v1554
  %1557 = vrot.lane.b32.xlu0 %v1555, 64
  %v1558 = vpop.permute.xlu0 %1557
  %v1560 = vmul.f32 %v1542, %v1558
  %v1561 = vld [vmem:[#allocation2 + $0x28] sm:$0xff]
  %1562 = vmatprep.subr.mxu0 0.0
  %1563 = vmatpush1.msra.mxu0 0.0
  %1564 = vmatprep.subr.mxu0 0.0
  %1565 = vmatpush1.msra.mxu0 0.0
  %1566 = vmatprep.subr.mxu0 0.0
  %1567 = vmatpush1.msra.mxu0 0.0
  %1568 = vmatprep.subr.mxu0 0.0
  %1569 = vmatpush1.msra.mxu0 0.0
  %1570 = vmatprep.subr.mxu0 0.0
  %1571 = vmatpush1.msra.mxu0 0.0
  %1572 = vmatprep.subr.mxu0 0.0
  %1573 = vmatpush1.msra.mxu0 0.0
  %1574 = vmatprep.subr.mxu0 0.0
  %1575 = vmatpush1.msra.mxu0 0.0
  %1576 = vmatprep.subr.mxu0 0.0
  %1577 = vmatpush1.msra.mxu0 0.0
  %1578 = vmatprep.subr.mxu0 0.0
  %1579 = vmatpush1.msra.mxu0 0.0
  %1580 = vmatprep.subr.mxu0 0.0
  %1581 = vmatpush1.msra.mxu0 0.0
  %1582 = vmatprep.subr.mxu0 0.0
  %1583 = vmatpush1.msra.mxu0 0.0
  %1584 = vmatprep.subr.mxu0 0.0
  %1585 = vmatpush1.msra.mxu0 0.0
  %1586 = vmatprep.subr.mxu0 0.0
  %1587 = vmatpush1.msra.mxu0 %v43
  %1588 = vmatprep.subr.mxu0 0.0
  %1589 = vmatpush1.msra.mxu0 %v42
  %1590 = vmatprep.subr.mxu0 0.0
  %1591 = vmatpush1.msra.mxu0 %v41
  %1592 = vmatprep.subr.mxu0 0.0
  %1593 = vmatpush1.msra.mxu0 %v40
  %1594 = vmatprep.subr.mxu0 0.0
  %1595 = vmatpush2.msra.mxu0 0.0
  %1596 = vmatprep.subr.mxu0 0.0
  %1597 = vmatpush2.msra.mxu0 0.0
  %1598 = vmatprep.subr.mxu0 0.0
  %1599 = vmatpush2.msra.mxu0 0.0
  %1600 = vmatprep.subr.mxu0 0.0
  %1601 = vmatpush2.msra.mxu0 0.0
  %1602 = vmatprep.subr.mxu0 0.0
  %1603 = vmatpush2.msra.mxu0 0.0
  %1604 = vmatprep.subr.mxu0 0.0
  %1605 = vmatpush2.msra.mxu0 0.0
  %1606 = vmatprep.subr.mxu0 0.0
  %1607 = vmatpush2.msra.mxu0 0.0
  %1608 = vmatprep.subr.mxu0 0.0
  %1609 = vmatpush2.msra.mxu0 0.0
  %1610 = vmatprep.subr.mxu0 0.0
  %1611 = vmatpush2.msra.mxu0 0.0
  %1612 = vmatprep.subr.mxu0 0.0
  %1613 = vmatpush2.msra.mxu0 0.0
  %1614 = vmatprep.subr.mxu0 0.0
  %1615 = vmatpush2.msra.mxu0 0.0
  %1616 = vmatprep.subr.mxu0 0.0
  %1617 = vmatpush2.msra.mxu0 0.0
  %1618 = vmatprep.subr.mxu0 0.0
  %1619 = vmatpush2.msra.mxu0 0.0
  %1620 = vmatprep.subr.mxu0 0.0
  %1621 = vmatpush2.msra.mxu0 0.0
  %1622 = vmatprep.subr.mxu0 0.0
  %1623 = vmatpush2.msra.mxu0 0.0
  %1624 = vmatprep.subr.mxu0 0.0
  %1625 = vmatpush2.msra.mxu0 0.0
  %1626 = vmatprep.mubr.f32.mxu0 0.0
  %1627 = vmatmul.mubr.f32.gmra.mxu0 %v1464
  %v1628 = vpop.f32.mrf.mxu0
  %v1629 = vadd.f32 0.0, %v1628
  %v1630 = vpop.f32.mrf.mxu0
  %1631 = vdwg.mxu0
  %v1632 = vadd.f32 %v1561, %v1629
  %v1633 = vsub.f32 0.0, %v1632
  %v1634 = vmul.f32 %v1633, 1.442695
  %v1635 = vpow.pop %v1634
  %v1636 = vadd.f32 %v1635, 1.0
  %v1637 = vrcp.pop %v1636
  %v1638 = vmul.f32 1.0, %v1637
  %v1639 = vtanh.pop %v1632
  %v1640 = vmul.f32 %v1638, %v1379
  %1642 = vrot.lane.b32.xlu0 %v1639, 64
  %v1643 = vpop.permute.xlu0 %1642
  %v1645 = vmul.f32 %v1638, %v1643
  %1647 = vrot.lane.b32.xlu0 %v1645, 32
  %v1648 = vpop.permute.xlu0 %1647
  %v1650 = vadd.f32 %v1640, %v1648
  %v1651 = vtanh.pop %v1650
  %1653 = vrot.lane.b32.xlu0 %v1651, 64
  %v1654 = vpop.permute.xlu0 %1653
  %v1656 = vmul.f32 %v1638, %v1654
  %1658 = vrot.lane.b32.xlu0 %v1560, 32
  %v1659 = vpop.permute.xlu0 %1658
  %v1660 = vsel %vm64, %v1659, 0
  %1662 = vmatprep.subr.mxu0 0.0
  %1663 = vmatpush1.msra.mxu0 0.0
  %1664 = vmatprep.subr.mxu0 0.0
  %1665 = vmatpush1.msra.mxu0 0.0
  %1666 = vmatprep.subr.mxu0 0.0
  %1667 = vmatpush1.msra.mxu0 0.0
  %1668 = vmatprep.subr.mxu0 0.0
  %1669 = vmatpush1.msra.mxu0 0.0
  %1670 = vmatprep.subr.mxu0 0.0
  %1671 = vmatpush1.msra.mxu0 0.0
  %1672 = vmatprep.subr.mxu0 0.0
  %1673 = vmatpush1.msra.mxu0 0.0
  %1674 = vmatprep.subr.mxu0 0.0
  %1675 = vmatpush1.msra.mxu0 0.0
  %1676 = vmatprep.subr.mxu0 0.0
  %1677 = vmatpush1.msra.mxu0 0.0
  %1678 = vmatprep.subr.mxu0 0.0
  %1679 = vmatpush1.msra.mxu0 0.0
  %1680 = vmatprep.subr.mxu0 0.0
  %1681 = vmatpush1.msra.mxu0 0.0
  %1682 = vmatprep.subr.mxu0 0.0
  %1683 = vmatpush1.msra.mxu0 0.0
  %1684 = vmatprep.subr.mxu0 0.0
  %1685 = vmatpush1.msra.mxu0 0.0
  %1686 = vmatprep.subr.mxu0 0.0
  %1687 = vmatpush1.msra.mxu0 %v47
  %1688 = vmatprep.subr.mxu0 0.0
  %1689 = vmatpush1.msra.mxu0 %v46
  %1690 = vmatprep.subr.mxu0 0.0
  %1691 = vmatpush1.msra.mxu0 %v45
  %1692 = vmatprep.subr.mxu0 0.0
  %1693 = vmatpush1.msra.mxu0 %v44
  %1694 = vmatprep.subr.mxu0 0.0
  %1695 = vmatpush2.msra.mxu0 0.0
  %1696 = vmatprep.subr.mxu0 0.0
  %1697 = vmatpush2.msra.mxu0 0.0
  %1698 = vmatprep.subr.mxu0 0.0
  %1699 = vmatpush2.msra.mxu0 0.0
  %1700 = vmatprep.subr.mxu0 0.0
  %1701 = vmatpush2.msra.mxu0 0.0
  %1702 = vmatprep.subr.mxu0 0.0
  %1703 = vmatpush2.msra.mxu0 0.0
  %1704 = vmatprep.subr.mxu0 0.0
  %1705 = vmatpush2.msra.mxu0 0.0
  %1706 = vmatprep.subr.mxu0 0.0
  %1707 = vmatpush2.msra.mxu0 0.0
  %1708 = vmatprep.subr.mxu0 0.0
  %1709 = vmatpush2.msra.mxu0 0.0
  %1710 = vmatprep.subr.mxu0 0.0
  %1711 = vmatpush2.msra.mxu0 0.0
  %1712 = vmatprep.subr.mxu0 0.0
  %1713 = vmatpush2.msra.mxu0 0.0
  %1714 = vmatprep.subr.mxu0 0.0
  %1715 = vmatpush2.msra.mxu0 0.0
  %1716 = vmatprep.subr.mxu0 0.0
  %1717 = vmatpush2.msra.mxu0 0.0
  %1718 = vmatprep.subr.mxu0 0.0
  %1719 = vmatpush2.msra.mxu0 0.0
  %1720 = vmatprep.subr.mxu0 0.0
  %1721 = vmatpush2.msra.mxu0 0.0
  %1722 = vmatprep.subr.mxu0 0.0
  %1723 = vmatpush2.msra.mxu0 0.0
  %1724 = vmatprep.subr.mxu0 0.0
  %1725 = vmatpush2.msra.mxu0 0.0
  %1726 = vmatprep.mubr.f32.mxu0 0.0
  %1727 = vmatmul.mubr.f32.gmra.mxu0 %v1660
  %v1728 = vpop.f32.mrf.mxu0
  %v1729 = vadd.f32 0.0, %v1728
  %v1730 = vpop.f32.mrf.mxu0
  %1731 = vdwg.mxu0
  %1733 = vrot.lane.b32.xlu0 %v1656, 32
  %v1734 = vpop.permute.xlu0 %1733
  %v1735 = vsel %vm64, %v1734, 0
  %1737 = vmatprep.subr.mxu0 0.0
  %1738 = vmatpush1.msra.mxu0 0.0
  %1739 = vmatprep.subr.mxu0 0.0
  %1740 = vmatpush1.msra.mxu0 0.0
  %1741 = vmatprep.subr.mxu0 0.0
  %1742 = vmatpush1.msra.mxu0 0.0
  %1743 = vmatprep.subr.mxu0 0.0
  %1744 = vmatpush1.msra.mxu0 0.0
  %1745 = vmatprep.subr.mxu0 0.0
  %1746 = vmatpush1.msra.mxu0 0.0
  %1747 = vmatprep.subr.mxu0 0.0
  %1748 = vmatpush1.msra.mxu0 0.0
  %1749 = vmatprep.subr.mxu0 0.0
  %1750 = vmatpush1.msra.mxu0 0.0
  %1751 = vmatprep.subr.mxu0 0.0
  %1752 = vmatpush1.msra.mxu0 0.0
  %1753 = vmatprep.subr.mxu0 0.0
  %1754 = vmatpush1.msra.mxu0 0.0
  %1755 = vmatprep.subr.mxu0 0.0
  %1756 = vmatpush1.msra.mxu0 0.0
  %1757 = vmatprep.subr.mxu0 0.0
  %1758 = vmatpush1.msra.mxu0 0.0
  %1759 = vmatprep.subr.mxu0 0.0
  %1760 = vmatpush1.msra.mxu0 0.0
  %1761 = vmatprep.subr.mxu0 0.0
  %1762 = vmatpush1.msra.mxu0 %v39
  %1763 = vmatprep.subr.mxu0 0.0
  %1764 = vmatpush1.msra.mxu0 %v38
  %1765 = vmatprep.subr.mxu0 0.0
  %1766 = vmatpush1.msra.mxu0 %v37
  %1767 = vmatprep.subr.mxu0 0.0
  %1768 = vmatpush1.msra.mxu0 %v36
  %1769 = vmatprep.subr.mxu0 0.0
  %1770 = vmatpush2.msra.mxu0 0.0
  %1771 = vmatprep.subr.mxu0 0.0
  %1772 = vmatpush2.msra.mxu0 0.0
  %1773 = vmatprep.subr.mxu0 0.0
  %1774 = vmatpush2.msra.mxu0 0.0
  %1775 = vmatprep.subr.mxu0 0.0
  %1776 = vmatpush2.msra.mxu0 0.0
  %1777 = vmatprep.subr.mxu0 0.0
  %1778 = vmatpush2.msra.mxu0 0.0
  %1779 = vmatprep.subr.mxu0 0.0
  %1780 = vmatpush2.msra.mxu0 0.0
  %1781 = vmatprep.subr.mxu0 0.0
  %1782 = vmatpush2.msra.mxu0 0.0
  %1783 = vmatprep.subr.mxu0 0.0
  %1784 = vmatpush2.msra.mxu0 0.0
  %1785 = vmatprep.subr.mxu0 0.0
  %1786 = vmatpush2.msra.mxu0 0.0
  %1787 = vmatprep.subr.mxu0 0.0
  %1788 = vmatpush2.msra.mxu0 0.0
  %1789 = vmatprep.subr.mxu0 0.0
  %1790 = vmatpush2.msra.mxu0 0.0
  %1791 = vmatprep.subr.mxu0 0.0
  %1792 = vmatpush2.msra.mxu0 0.0
  %1793 = vmatprep.subr.mxu0 0.0
  %1794 = vmatpush2.msra.mxu0 0.0
  %1795 = vmatprep.subr.mxu0 0.0
  %1796 = vmatpush2.msra.mxu0 0.0
  %1797 = vmatprep.subr.mxu0 0.0
  %1798 = vmatpush2.msra.mxu0 0.0
  %1799 = vmatprep.subr.mxu0 0.0
  %1800 = vmatpush2.msra.mxu0 0.0
  %1801 = vmatprep.mubr.f32.mxu0 0.0
  %1802 = vmatmul.mubr.f32.gmra.mxu0 %v1735
  %v1803 = vpop.f32.mrf.mxu0
  %v1804 = vadd.f32 %v1729, %v1803
  %v1805 = vpop.f32.mrf.mxu0
  %1806 = vdwg.mxu0
  %v1807 = vadd.f32 %v1804, %v450
  %v1808 = vsub.f32 0.0, %v1807
  %v1809 = vmul.f32 %v1808, 1.442695
  %v1810 = vpow.pop %v1809
  %v1811 = vadd.f32 %v1810, 1.0
  %v1812 = vrcp.pop %v1811
  %v1813 = vmul.f32 1.0, %v1812
  %v1814 = vtanh.pop %v1807
  %v1815 = vmul.f32 %v1813, %v1554
  %1817 = vrot.lane.b32.xlu0 %v1814, 64
  %v1818 = vpop.permute.xlu0 %1817
  %v1820 = vmul.f32 %v1813, %v1818
  %1822 = vrot.lane.b32.xlu0 %v1820, 32
  %v1823 = vpop.permute.xlu0 %1822
  %v1825 = vadd.f32 %v1815, %v1823
  %v1826 = vtanh.pop %v1825
  %1828 = vrot.lane.b32.xlu0 %v1826, 64
  %v1829 = vpop.permute.xlu0 %1828
  %v1831 = vmul.f32 %v1813, %v1829
  %v1832 = vld [vmem:[#allocation2 + $0x30] sm:$0xff]
  %1833 = vmatprep.subr.mxu0 0.0
  %1834 = vmatpush1.msra.mxu0 0.0
  %1835 = vmatprep.subr.mxu0 0.0
  %1836 = vmatpush1.msra.mxu0 0.0
  %1837 = vmatprep.subr.mxu0 0.0
  %1838 = vmatpush1.msra.mxu0 0.0
  %1839 = vmatprep.subr.mxu0 0.0
  %1840 = vmatpush1.msra.mxu0 0.0
  %1841 = vmatprep.subr.mxu0 0.0
  %1842 = vmatpush1.msra.mxu0 0.0
  %1843 = vmatprep.subr.mxu0 0.0
  %1844 = vmatpush1.msra.mxu0 0.0
  %1845 = vmatprep.subr.mxu0 0.0
  %1846 = vmatpush1.msra.mxu0 0.0
  %1847 = vmatprep.subr.mxu0 0.0
  %1848 = vmatpush1.msra.mxu0 0.0
  %1849 = vmatprep.subr.mxu0 0.0
  %1850 = vmatpush1.msra.mxu0 0.0
  %1851 = vmatprep.subr.mxu0 0.0
  %1852 = vmatpush1.msra.mxu0 0.0
  %1853 = vmatprep.subr.mxu0 0.0
  %1854 = vmatpush1.msra.mxu0 0.0
  %1855 = vmatprep.subr.mxu0 0.0
  %1856 = vmatpush1.msra.mxu0 0.0
  %1857 = vmatprep.subr.mxu0 0.0
  %1858 = vmatpush1.msra.mxu0 %v43
  %1859 = vmatprep.subr.mxu0 0.0
  %1860 = vmatpush1.msra.mxu0 %v42
  %1861 = vmatprep.subr.mxu0 0.0
  %1862 = vmatpush1.msra.mxu0 %v41
  %1863 = vmatprep.subr.mxu0 0.0
  %1864 = vmatpush1.msra.mxu0 %v40
  %1865 = vmatprep.subr.mxu0 0.0
  %1866 = vmatpush2.msra.mxu0 0.0
  %1867 = vmatprep.subr.mxu0 0.0
  %1868 = vmatpush2.msra.mxu0 0.0
  %1869 = vmatprep.subr.mxu0 0.0
  %1870 = vmatpush2.msra.mxu0 0.0
  %1871 = vmatprep.subr.mxu0 0.0
  %1872 = vmatpush2.msra.mxu0 0.0
  %1873 = vmatprep.subr.mxu0 0.0
  %1874 = vmatpush2.msra.mxu0 0.0
  %1875 = vmatprep.subr.mxu0 0.0
  %1876 = vmatpush2.msra.mxu0 0.0
  %1877 = vmatprep.subr.mxu0 0.0
  %1878 = vmatpush2.msra.mxu0 0.0
  %1879 = vmatprep.subr.mxu0 0.0
  %1880 = vmatpush2.msra.mxu0 0.0
  %1881 = vmatprep.subr.mxu0 0.0
  %1882 = vmatpush2.msra.mxu0 0.0
  %1883 = vmatprep.subr.mxu0 0.0
  %1884 = vmatpush2.msra.mxu0 0.0
  %1885 = vmatprep.subr.mxu0 0.0
  %1886 = vmatpush2.msra.mxu0 0.0
  %1887 = vmatprep.subr.mxu0 0.0
  %1888 = vmatpush2.msra.mxu0 0.0
  %1889 = vmatprep.subr.mxu0 0.0
  %1890 = vmatpush2.msra.mxu0 0.0
  %1891 = vmatprep.subr.mxu0 0.0
  %1892 = vmatpush2.msra.mxu0 0.0
  %1893 = vmatprep.subr.mxu0 0.0
  %1894 = vmatpush2.msra.mxu0 0.0
  %1895 = vmatprep.subr.mxu0 0.0
  %1896 = vmatpush2.msra.mxu0 0.0
  %1897 = vmatprep.mubr.f32.mxu0 0.0
  %1898 = vmatmul.mubr.f32.gmra.mxu0 %v1735
  %v1899 = vpop.f32.mrf.mxu0
  %v1900 = vadd.f32 0.0, %v1899
  %v1901 = vpop.f32.mrf.mxu0
  %1902 = vdwg.mxu0
  %v1903 = vadd.f32 %v1832, %v1900
  %v1904 = vsub.f32 0.0, %v1903
  %v1905 = vmul.f32 %v1904, 1.442695
  %v1906 = vpow.pop %v1905
  %v1907 = vadd.f32 %v1906, 1.0
  %v1908 = vrcp.pop %v1907
  %v1909 = vmul.f32 1.0, %v1908
  %v1910 = vtanh.pop %v1903
  %v1911 = vmul.f32 %v1909, %v1650
  %1913 = vrot.lane.b32.xlu0 %v1910, 64
  %v1914 = vpop.permute.xlu0 %1913
  %v1916 = vmul.f32 %v1909, %v1914
  %1918 = vrot.lane.b32.xlu0 %v1916, 32
  %v1919 = vpop.permute.xlu0 %1918
  %v1921 = vadd.f32 %v1911, %v1919
  %v1922 = vtanh.pop %v1921
  %1924 = vrot.lane.b32.xlu0 %v1922, 64
  %v1925 = vpop.permute.xlu0 %1924
  %v1927 = vmul.f32 %v1909, %v1925
  %1929 = vrot.lane.b32.xlu0 %v1831, 32
  %v1930 = vpop.permute.xlu0 %1929
  %v1931 = vsel %vm64, %v1930, 0
  %1933 = vmatprep.subr.mxu0 0.0
  %1934 = vmatpush1.msra.mxu0 0.0
  %1935 = vmatprep.subr.mxu0 0.0
  %1936 = vmatpush1.msra.mxu0 0.0
  %1937 = vmatprep.subr.mxu0 0.0
  %1938 = vmatpush1.msra.mxu0 0.0
  %1939 = vmatprep.subr.mxu0 0.0
  %1940 = vmatpush1.msra.mxu0 0.0
  %1941 = vmatprep.subr.mxu0 0.0
  %1942 = vmatpush1.msra.mxu0 0.0
  %1943 = vmatprep.subr.mxu0 0.0
  %1944 = vmatpush1.msra.mxu0 0.0
  %1945 = vmatprep.subr.mxu0 0.0
  %1946 = vmatpush1.msra.mxu0 0.0
  %1947 = vmatprep.subr.mxu0 0.0
  %1948 = vmatpush1.msra.mxu0 0.0
  %1949 = vmatprep.subr.mxu0 0.0
  %1950 = vmatpush1.msra.mxu0 0.0
  %1951 = vmatprep.subr.mxu0 0.0
  %1952 = vmatpush1.msra.mxu0 0.0
  %1953 = vmatprep.subr.mxu0 0.0
  %1954 = vmatpush1.msra.mxu0 0.0
  %1955 = vmatprep.subr.mxu0 0.0
  %1956 = vmatpush1.msra.mxu0 0.0
  %1957 = vmatprep.subr.mxu0 0.0
  %1958 = vmatpush1.msra.mxu0 %v47
  %1959 = vmatprep.subr.mxu0 0.0
  %1960 = vmatpush1.msra.mxu0 %v46
  %1961 = vmatprep.subr.mxu0 0.0
  %1962 = vmatpush1.msra.mxu0 %v45
  %1963 = vmatprep.subr.mxu0 0.0
  %1964 = vmatpush1.msra.mxu0 %v44
  %1965 = vmatprep.subr.mxu0 0.0
  %1966 = vmatpush2.msra.mxu0 0.0
  %1967 = vmatprep.subr.mxu0 0.0
  %1968 = vmatpush2.msra.mxu0 0.0
  %1969 = vmatprep.subr.mxu0 0.0
  %1970 = vmatpush2.msra.mxu0 0.0
  %1971 = vmatprep.subr.mxu0 0.0
  %1972 = vmatpush2.msra.mxu0 0.0
  %1973 = vmatprep.subr.mxu0 0.0
  %1974 = vmatpush2.msra.mxu0 0.0
  %1975 = vmatprep.subr.mxu0 0.0
  %1976 = vmatpush2.msra.mxu0 0.0
  %1977 = vmatprep.subr.mxu0 0.0
  %1978 = vmatpush2.msra.mxu0 0.0
  %1979 = vmatprep.subr.mxu0 0.0
  %1980 = vmatpush2.msra.mxu0 0.0
  %1981 = vmatprep.subr.mxu0 0.0
  %1982 = vmatpush2.msra.mxu0 0.0
  %1983 = vmatprep.subr.mxu0 0.0
  %1984 = vmatpush2.msra.mxu0 0.0
  %1985 = vmatprep.subr.mxu0 0.0
  %1986 = vmatpush2.msra.mxu0 0.0
  %1987 = vmatprep.subr.mxu0 0.0
  %1988 = vmatpush2.msra.mxu0 0.0
  %1989 = vmatprep.subr.mxu0 0.0
  %1990 = vmatpush2.msra.mxu0 0.0
  %1991 = vmatprep.subr.mxu0 0.0
  %1992 = vmatpush2.msra.mxu0 0.0
  %1993 = vmatprep.subr.mxu0 0.0
  %1994 = vmatpush2.msra.mxu0 0.0
  %1995 = vmatprep.subr.mxu0 0.0
  %1996 = vmatpush2.msra.mxu0 0.0
  %1997 = vmatprep.mubr.f32.mxu0 0.0
  %1998 = vmatmul.mubr.f32.gmra.mxu0 %v1931
  %v1999 = vpop.f32.mrf.mxu0
  %v2000 = vadd.f32 0.0, %v1999
  %v2001 = vpop.f32.mrf.mxu0
  %2002 = vdwg.mxu0
  %2004 = vrot.lane.b32.xlu0 %v1927, 32
  %v2005 = vpop.permute.xlu0 %2004
  %v2006 = vsel %vm64, %v2005, 0
  %2008 = vmatprep.subr.mxu0 0.0
  %2009 = vmatpush1.msra.mxu0 0.0
  %2010 = vmatprep.subr.mxu0 0.0
  %2011 = vmatpush1.msra.mxu0 0.0
  %2012 = vmatprep.subr.mxu0 0.0
  %2013 = vmatpush1.msra.mxu0 0.0
  %2014 = vmatprep.subr.mxu0 0.0
  %2015 = vmatpush1.msra.mxu0 0.0
  %2016 = vmatprep.subr.mxu0 0.0
  %2017 = vmatpush1.msra.mxu0 0.0
  %2018 = vmatprep.subr.mxu0 0.0
  %2019 = vmatpush1.msra.mxu0 0.0
  %2020 = vmatprep.subr.mxu0 0.0
  %2021 = vmatpush1.msra.mxu0 0.0
  %2022 = vmatprep.subr.mxu0 0.0
  %2023 = vmatpush1.msra.mxu0 0.0
  %2024 = vmatprep.subr.mxu0 0.0
  %2025 = vmatpush1.msra.mxu0 0.0
  %2026 = vmatprep.subr.mxu0 0.0
  %2027 = vmatpush1.msra.mxu0 0.0
  %2028 = vmatprep.subr.mxu0 0.0
  %2029 = vmatpush1.msra.mxu0 0.0
  %2030 = vmatprep.subr.mxu0 0.0
  %2031 = vmatpush1.msra.mxu0 0.0
  %2032 = vmatprep.subr.mxu0 0.0
  %2033 = vmatpush1.msra.mxu0 %v39
  %2034 = vmatprep.subr.mxu0 0.0
  %2035 = vmatpush1.msra.mxu0 %v38
  %2036 = vmatprep.subr.mxu0 0.0
  %2037 = vmatpush1.msra.mxu0 %v37
  %2038 = vmatprep.subr.mxu0 0.0
  %2039 = vmatpush1.msra.mxu0 %v36
  %2040 = vmatprep.subr.mxu0 0.0
  %2041 = vmatpush2.msra.mxu0 0.0
  %2042 = vmatprep.subr.mxu0 0.0
  %2043 = vmatpush2.msra.mxu0 0.0
  %2044 = vmatprep.subr.mxu0 0.0
  %2045 = vmatpush2.msra.mxu0 0.0
  %2046 = vmatprep.subr.mxu0 0.0
  %2047 = vmatpush2.msra.mxu0 0.0
  %2048 = vmatprep.subr.mxu0 0.0
  %2049 = vmatpush2.msra.mxu0 0.0
  %2050 = vmatprep.subr.mxu0 0.0
  %2051 = vmatpush2.msra.mxu0 0.0
  %2052 = vmatprep.subr.mxu0 0.0
  %2053 = vmatpush2.msra.mxu0 0.0
  %2054 = vmatprep.subr.mxu0 0.0
  %2055 = vmatpush2.msra.mxu0 0.0
  %2056 = vmatprep.subr.mxu0 0.0
  %2057 = vmatpush2.msra.mxu0 0.0
  %2058 = vmatprep.subr.mxu0 0.0
  %2059 = vmatpush2.msra.mxu0 0.0
  %2060 = vmatprep.subr.mxu0 0.0
  %2061 = vmatpush2.msra.mxu0 0.0
  %2062 = vmatprep.subr.mxu0 0.0
  %2063 = vmatpush2.msra.mxu0 0.0
  %2064 = vmatprep.subr.mxu0 0.0
  %2065 = vmatpush2.msra.mxu0 0.0
  %2066 = vmatprep.subr.mxu0 0.0
  %2067 = vmatpush2.msra.mxu0 0.0
  %2068 = vmatprep.subr.mxu0 0.0
  %2069 = vmatpush2.msra.mxu0 0.0
  %2070 = vmatprep.subr.mxu0 0.0
  %2071 = vmatpush2.msra.mxu0 0.0
  %2072 = vmatprep.mubr.f32.mxu0 0.0
  %2073 = vmatmul.mubr.f32.gmra.mxu0 %v2006
  %v2074 = vpop.f32.mrf.mxu0
  %v2075 = vadd.f32 %v2000, %v2074
  %v2076 = vpop.f32.mrf.mxu0
  %2077 = vdwg.mxu0
  %v2078 = vadd.f32 %v2075, %v450
  %v2079 = vsub.f32 0.0, %v2078
  %v2080 = vmul.f32 %v2079, 1.442695
  %v2081 = vpow.pop %v2080
  %v2082 = vadd.f32 %v2081, 1.0
  %v2083 = vrcp.pop %v2082
  %v2084 = vmul.f32 1.0, %v2083
  %v2085 = vtanh.pop %v2078
  %v2086 = vmul.f32 %v2084, %v1825
  %2088 = vrot.lane.b32.xlu0 %v2085, 64
  %v2089 = vpop.permute.xlu0 %2088
  %v2091 = vmul.f32 %v2084, %v2089
  %2093 = vrot.lane.b32.xlu0 %v2091, 32
  %v2094 = vpop.permute.xlu0 %2093
  %v2096 = vadd.f32 %v2086, %v2094
  %v2097 = vtanh.pop %v2096
  %2099 = vrot.lane.b32.xlu0 %v2097, 64
  %v2100 = vpop.permute.xlu0 %2099
  %v2102 = vmul.f32 %v2084, %v2100
  %v2103 = vld [vmem:[#allocation2 + $0x38] sm:$0xff]
  %2104 = vmatprep.subr.mxu0 0.0
  %2105 = vmatpush1.msra.mxu0 0.0
  %2106 = vmatprep.subr.mxu0 0.0
  %2107 = vmatpush1.msra.mxu0 0.0
  %2108 = vmatprep.subr.mxu0 0.0
  %2109 = vmatpush1.msra.mxu0 0.0
  %2110 = vmatprep.subr.mxu0 0.0
  %2111 = vmatpush1.msra.mxu0 0.0
  %2112 = vmatprep.subr.mxu0 0.0
  %2113 = vmatpush1.msra.mxu0 0.0
  %2114 = vmatprep.subr.mxu0 0.0
  %2115 = vmatpush1.msra.mxu0 0.0
  %2116 = vmatprep.subr.mxu0 0.0
  %2117 = vmatpush1.msra.mxu0 0.0
  %2118 = vmatprep.subr.mxu0 0.0
  %2119 = vmatpush1.msra.mxu0 0.0
  %2120 = vmatprep.subr.mxu0 0.0
  %2121 = vmatpush1.msra.mxu0 0.0
  %2122 = vmatprep.subr.mxu0 0.0
  %2123 = vmatpush1.msra.mxu0 0.0
  %2124 = vmatprep.subr.mxu0 0.0
  %2125 = vmatpush1.msra.mxu0 0.0
  %2126 = vmatprep.subr.mxu0 0.0
  %2127 = vmatpush1.msra.mxu0 0.0
  %2128 = vmatprep.subr.mxu0 0.0
  %2129 = vmatpush1.msra.mxu0 %v43
  %2130 = vmatprep.subr.mxu0 0.0
  %2131 = vmatpush1.msra.mxu0 %v42
  %2132 = vmatprep.subr.mxu0 0.0
  %2133 = vmatpush1.msra.mxu0 %v41
  %2134 = vmatprep.subr.mxu0 0.0
  %2135 = vmatpush1.msra.mxu0 %v40
  %2136 = vmatprep.subr.mxu0 0.0
  %2137 = vmatpush2.msra.mxu0 0.0
  %2138 = vmatprep.subr.mxu0 0.0
  %2139 = vmatpush2.msra.mxu0 0.0
  %2140 = vmatprep.subr.mxu0 0.0
  %2141 = vmatpush2.msra.mxu0 0.0
  %2142 = vmatprep.subr.mxu0 0.0
  %2143 = vmatpush2.msra.mxu0 0.0
  %2144 = vmatprep.subr.mxu0 0.0
  %2145 = vmatpush2.msra.mxu0 0.0
  %2146 = vmatprep.subr.mxu0 0.0
  %2147 = vmatpush2.msra.mxu0 0.0
  %2148 = vmatprep.subr.mxu0 0.0
  %2149 = vmatpush2.msra.mxu0 0.0
  %2150 = vmatprep.subr.mxu0 0.0
  %2151 = vmatpush2.msra.mxu0 0.0
  %2152 = vmatprep.subr.mxu0 0.0
  %2153 = vmatpush2.msra.mxu0 0.0
  %2154 = vmatprep.subr.mxu0 0.0
  %2155 = vmatpush2.msra.mxu0 0.0
  %2156 = vmatprep.subr.mxu0 0.0
  %2157 = vmatpush2.msra.mxu0 0.0
  %2158 = vmatprep.subr.mxu0 0.0
  %2159 = vmatpush2.msra.mxu0 0.0
  %2160 = vmatprep.subr.mxu0 0.0
  %2161 = vmatpush2.msra.mxu0 0.0
  %2162 = vmatprep.subr.mxu0 0.0
  %2163 = vmatpush2.msra.mxu0 0.0
  %2164 = vmatprep.subr.mxu0 0.0
  %2165 = vmatpush2.msra.mxu0 0.0
  %2166 = vmatprep.subr.mxu0 0.0
  %2167 = vmatpush2.msra.mxu0 0.0
  %2168 = vmatprep.mubr.f32.mxu0 0.0
  %2169 = vmatmul.mubr.f32.gmra.mxu0 %v2006
  %v2170 = vpop.f32.mrf.mxu0
  %v2171 = vadd.f32 0.0, %v2170
  %v2172 = vpop.f32.mrf.mxu0
  %2173 = vdwg.mxu0
  %v2174 = vadd.f32 %v2103, %v2171
  %v2175 = vsub.f32 0.0, %v2174
  %v2176 = vmul.f32 %v2175, 1.442695
  %v2177 = vpow.pop %v2176
  %v2178 = vadd.f32 %v2177, 1.0
  %v2179 = vrcp.pop %v2178
  %v2180 = vmul.f32 1.0, %v2179
  %v2181 = vtanh.pop %v2174
  %v2182 = vmul.f32 %v2180, %v1921
  %2184 = vrot.lane.b32.xlu0 %v2181, 64
  %v2185 = vpop.permute.xlu0 %2184
  %v2187 = vmul.f32 %v2180, %v2185
  %2189 = vrot.lane.b32.xlu0 %v2187, 32
  %v2190 = vpop.permute.xlu0 %2189
  %v2192 = vadd.f32 %v2182, %v2190
  %v2193 = vtanh.pop %v2192
  %2195 = vrot.lane.b32.xlu0 %v2193, 64
  %v2196 = vpop.permute.xlu0 %2195
  %v2198 = vmul.f32 %v2180, %v2196
  %2200 = vrot.lane.b32.xlu0 %v2102, 32
  %v2201 = vpop.permute.xlu0 %2200
  %v2202 = vsel %vm64, %v2201, 0
  %2204 = vmatprep.subr.mxu0 0.0
  %2205 = vmatpush1.msra.mxu0 0.0
  %2206 = vmatprep.subr.mxu0 0.0
  %2207 = vmatpush1.msra.mxu0 0.0
  %2208 = vmatprep.subr.mxu0 0.0
  %2209 = vmatpush1.msra.mxu0 0.0
  %2210 = vmatprep.subr.mxu0 0.0
  %2211 = vmatpush1.msra.mxu0 0.0
  %2212 = vmatprep.subr.mxu0 0.0
  %2213 = vmatpush1.msra.mxu0 0.0
  %2214 = vmatprep.subr.mxu0 0.0
  %2215 = vmatpush1.msra.mxu0 0.0
  %2216 = vmatprep.subr.mxu0 0.0
  %2217 = vmatpush1.msra.mxu0 0.0
  %2218 = vmatprep.subr.mxu0 0.0
  %2219 = vmatpush1.msra.mxu0 0.0
  %2220 = vmatprep.subr.mxu0 0.0
  %2221 = vmatpush1.msra.mxu0 0.0
  %2222 = vmatprep.subr.mxu0 0.0
  %2223 = vmatpush1.msra.mxu0 0.0
  %2224 = vmatprep.subr.mxu0 0.0
  %2225 = vmatpush1.msra.mxu0 0.0
  %2226 = vmatprep.subr.mxu0 0.0
  %2227 = vmatpush1.msra.mxu0 0.0
  %2228 = vmatprep.subr.mxu0 0.0
  %2229 = vmatpush1.msra.mxu0 %v47
  %2230 = vmatprep.subr.mxu0 0.0
  %2231 = vmatpush1.msra.mxu0 %v46
  %2232 = vmatprep.subr.mxu0 0.0
  %2233 = vmatpush1.msra.mxu0 %v45
  %2234 = vmatprep.subr.mxu0 0.0
  %2235 = vmatpush1.msra.mxu0 %v44
  %2236 = vmatprep.subr.mxu0 0.0
  %2237 = vmatpush2.msra.mxu0 0.0
  %2238 = vmatprep.subr.mxu0 0.0
  %2239 = vmatpush2.msra.mxu0 0.0
  %2240 = vmatprep.subr.mxu0 0.0
  %2241 = vmatpush2.msra.mxu0 0.0
  %2242 = vmatprep.subr.mxu0 0.0
  %2243 = vmatpush2.msra.mxu0 0.0
  %2244 = vmatprep.subr.mxu0 0.0
  %2245 = vmatpush2.msra.mxu0 0.0
  %2246 = vmatprep.subr.mxu0 0.0
  %2247 = vmatpush2.msra.mxu0 0.0
  %2248 = vmatprep.subr.mxu0 0.0
  %2249 = vmatpush2.msra.mxu0 0.0
  %2250 = vmatprep.subr.mxu0 0.0
  %2251 = vmatpush2.msra.mxu0 0.0
  %2252 = vmatprep.subr.mxu0 0.0
  %2253 = vmatpush2.msra.mxu0 0.0
  %2254 = vmatprep.subr.mxu0 0.0
  %2255 = vmatpush2.msra.mxu0 0.0
  %2256 = vmatprep.subr.mxu0 0.0
  %2257 = vmatpush2.msra.mxu0 0.0
  %2258 = vmatprep.subr.mxu0 0.0
  %2259 = vmatpush2.msra.mxu0 0.0
  %2260 = vmatprep.subr.mxu0 0.0
  %2261 = vmatpush2.msra.mxu0 0.0
  %2262 = vmatprep.subr.mxu0 0.0
  %2263 = vmatpush2.msra.mxu0 0.0
  %2264 = vmatprep.subr.mxu0 0.0
  %2265 = vmatpush2.msra.mxu0 0.0
  %2266 = vmatprep.subr.mxu0 0.0
  %2267 = vmatpush2.msra.mxu0 0.0
  %2268 = vmatprep.mubr.f32.mxu0 0.0
  %2269 = vmatmul.mubr.f32.gmra.mxu0 %v2202
  %v2270 = vpop.f32.mrf.mxu0
  %v2271 = vadd.f32 0.0, %v2270
  %v2272 = vpop.f32.mrf.mxu0
  %2273 = vdwg.mxu0
  %2275 = vrot.lane.b32.xlu0 %v2198, 32
  %v2276 = vpop.permute.xlu0 %2275
  %v2277 = vsel %vm64, %v2276, 0
  %2279 = vmatprep.subr.mxu0 0.0
  %2280 = vmatpush1.msra.mxu0 0.0
  %2281 = vmatprep.subr.mxu0 0.0
  %2282 = vmatpush1.msra.mxu0 0.0
  %2283 = vmatprep.subr.mxu0 0.0
  %2284 = vmatpush1.msra.mxu0 0.0
  %2285 = vmatprep.subr.mxu0 0.0
  %2286 = vmatpush1.msra.mxu0 0.0
  %2287 = vmatprep.subr.mxu0 0.0
  %2288 = vmatpush1.msra.mxu0 0.0
  %2289 = vmatprep.subr.mxu0 0.0
  %2290 = vmatpush1.msra.mxu0 0.0
  %2291 = vmatprep.subr.mxu0 0.0
  %2292 = vmatpush1.msra.mxu0 0.0
  %2293 = vmatprep.subr.mxu0 0.0
  %2294 = vmatpush1.msra.mxu0 0.0
  %2295 = vmatprep.subr.mxu0 0.0
  %2296 = vmatpush1.msra.mxu0 0.0
  %2297 = vmatprep.subr.mxu0 0.0
  %2298 = vmatpush1.msra.mxu0 0.0
  %2299 = vmatprep.subr.mxu0 0.0
  %2300 = vmatpush1.msra.mxu0 0.0
  %2301 = vmatprep.subr.mxu0 0.0
  %2302 = vmatpush1.msra.mxu0 0.0
  %2303 = vmatprep.subr.mxu0 0.0
  %2304 = vmatpush1.msra.mxu0 %v39
  %2305 = vmatprep.subr.mxu0 0.0
  %2306 = vmatpush1.msra.mxu0 %v38
  %2307 = vmatprep.subr.mxu0 0.0
  %2308 = vmatpush1.msra.mxu0 %v37
  %2309 = vmatprep.subr.mxu0 0.0
  %2310 = vmatpush1.msra.mxu0 %v36
  %2311 = vmatprep.subr.mxu0 0.0
  %2312 = vmatpush2.msra.mxu0 0.0
  %2313 = vmatprep.subr.mxu0 0.0
  %2314 = vmatpush2.msra.mxu0 0.0
  %2315 = vmatprep.subr.mxu0 0.0
  %2316 = vmatpush2.msra.mxu0 0.0
  %2317 = vmatprep.subr.mxu0 0.0
  %2318 = vmatpush2.msra.mxu0 0.0
  %2319 = vmatprep.subr.mxu0 0.0
  %2320 = vmatpush2.msra.mxu0 0.0
  %2321 = vmatprep.subr.mxu0 0.0
  %2322 = vmatpush2.msra.mxu0 0.0
  %2323 = vmatprep.subr.mxu0 0.0
  %2324 = vmatpush2.msra.mxu0 0.0
  %2325 = vmatprep.subr.mxu0 0.0
  %2326 = vmatpush2.msra.mxu0 0.0
  %2327 = vmatprep.subr.mxu0 0.0
  %2328 = vmatpush2.msra.mxu0 0.0
  %2329 = vmatprep.subr.mxu0 0.0
  %2330 = vmatpush2.msra.mxu0 0.0
  %2331 = vmatprep.subr.mxu0 0.0
  %2332 = vmatpush2.msra.mxu0 0.0
  %2333 = vmatprep.subr.mxu0 0.0
  %2334 = vmatpush2.msra.mxu0 0.0
  %2335 = vmatprep.subr.mxu0 0.0
  %2336 = vmatpush2.msra.mxu0 0.0
  %2337 = vmatprep.subr.mxu0 0.0
  %2338 = vmatpush2.msra.mxu0 0.0
  %2339 = vmatprep.subr.mxu0 0.0
  %2340 = vmatpush2.msra.mxu0 0.0
  %2341 = vmatprep.subr.mxu0 0.0
  %2342 = vmatpush2.msra.mxu0 0.0
  %2343 = vmatprep.mubr.f32.mxu0 0.0
  %2344 = vmatmul.mubr.f32.gmra.mxu0 %v2277
  %v2345 = vpop.f32.mrf.mxu0
  %v2346 = vadd.f32 %v2271, %v2345
  %v2347 = vpop.f32.mrf.mxu0
  %2348 = vdwg.mxu0
  %v2349 = vadd.f32 %v2346, %v450
  %v2350 = vsub.f32 0.0, %v2349
  %v2351 = vmul.f32 %v2350, 1.442695
  %v2352 = vpow.pop %v2351
  %v2353 = vadd.f32 %v2352, 1.0
  %v2354 = vrcp.pop %v2353
  %v2355 = vmul.f32 1.0, %v2354
  %v2356 = vtanh.pop %v2349
  %v2357 = vmul.f32 %v2355, %v2096
  %2359 = vrot.lane.b32.xlu0 %v2356, 64
  %v2360 = vpop.permute.xlu0 %2359
  %v2362 = vmul.f32 %v2355, %v2360
  %2364 = vrot.lane.b32.xlu0 %v2362, 32
  %v2365 = vpop.permute.xlu0 %2364
  %v2367 = vadd.f32 %v2357, %v2365
  %v2368 = vtanh.pop %v2367
  %2370 = vrot.lane.b32.xlu0 %v2368, 64
  %v2371 = vpop.permute.xlu0 %2370
  %v2373 = vmul.f32 %v2355, %v2371
  %v2374 = vld [vmem:[%s7] sm:$0xff]
  %v2375 = vld [vmem:[%s7 + $0x8] sm:$0xff]
  %v2376 = vld [vmem:[%s7 + $0x10] sm:$0xff]
  %v2377 = vld [vmem:[%s7 + $0x18] sm:$0xff]
  %v2378 = vld [vmem:[%s8] sm:$0x1]
  %v2380 = vlaneseq
  %v2381 = vshrl.u32 %v2380, 7
  %v2382 = vsub.s32 0, %v2381
  %v2383 = vrot.slane %v2378, %v2382
  %2386 = vrot.lane.b32.xlu0 %v2373, 32
  %v2387 = vpop.permute.xlu0 %2386
  %v2388 = vsel %vm64, %v2387, 0
  %2390 = vmatprep.subr.mxu0 0.0
  %2391 = vmatpush1.msra.mxu0 0.0
  %2392 = vmatprep.subr.mxu0 0.0
  %2393 = vmatpush1.msra.mxu0 0.0
  %2394 = vmatprep.subr.mxu0 0.0
  %2395 = vmatpush1.msra.mxu0 0.0
  %2396 = vmatprep.subr.mxu0 0.0
  %2397 = vmatpush1.msra.mxu0 0.0
  %2398 = vmatprep.subr.mxu0 0.0
  %2399 = vmatpush1.msra.mxu0 0.0
  %2400 = vmatprep.subr.mxu0 0.0
  %2401 = vmatpush1.msra.mxu0 0.0
  %2402 = vmatprep.subr.mxu0 0.0
  %2403 = vmatpush1.msra.mxu0 0.0
  %2404 = vmatprep.subr.mxu0 0.0
  %2405 = vmatpush1.msra.mxu0 0.0
  %2406 = vmatprep.subr.mxu0 0.0
  %2407 = vmatpush1.msra.mxu0 0.0
  %2408 = vmatprep.subr.mxu0 0.0
  %2409 = vmatpush1.msra.mxu0 0.0
  %2410 = vmatprep.subr.mxu0 0.0
  %2411 = vmatpush1.msra.mxu0 0.0
  %2412 = vmatprep.subr.mxu0 0.0
  %2413 = vmatpush1.msra.mxu0 0.0
  %2414 = vmatprep.subr.mxu0 0.0
  %2415 = vmatpush1.msra.mxu0 %v2377
  %2416 = vmatprep.subr.mxu0 0.0
  %2417 = vmatpush1.msra.mxu0 %v2376
  %2418 = vmatprep.subr.mxu0 0.0
  %2419 = vmatpush1.msra.mxu0 %v2375
  %2420 = vmatprep.subr.mxu0 0.0
  %2421 = vmatpush1.msra.mxu0 %v2374
  %2422 = vmatprep.subr.mxu0 0.0
  %2423 = vmatpush2.msra.mxu0 0.0
  %2424 = vmatprep.subr.mxu0 0.0
  %2425 = vmatpush2.msra.mxu0 0.0
  %2426 = vmatprep.subr.mxu0 0.0
  %2427 = vmatpush2.msra.mxu0 0.0
  %2428 = vmatprep.subr.mxu0 0.0
  %2429 = vmatpush2.msra.mxu0 0.0
  %2430 = vmatprep.subr.mxu0 0.0
  %2431 = vmatpush2.msra.mxu0 0.0
  %2432 = vmatprep.subr.mxu0 0.0
  %2433 = vmatpush2.msra.mxu0 0.0
  %2434 = vmatprep.subr.mxu0 0.0
  %2435 = vmatpush2.msra.mxu0 0.0
  %2436 = vmatprep.subr.mxu0 0.0
  %2437 = vmatpush2.msra.mxu0 0.0
  %2438 = vmatprep.subr.mxu0 0.0
  %2439 = vmatpush2.msra.mxu0 0.0
  %2440 = vmatprep.subr.mxu0 0.0
  %2441 = vmatpush2.msra.mxu0 0.0
  %2442 = vmatprep.subr.mxu0 0.0
  %2443 = vmatpush2.msra.mxu0 0.0
  %2444 = vmatprep.subr.mxu0 0.0
  %2445 = vmatpush2.msra.mxu0 0.0
  %2446 = vmatprep.subr.mxu0 0.0
  %2447 = vmatpush2.msra.mxu0 0.0
  %2448 = vmatprep.subr.mxu0 0.0
  %2449 = vmatpush2.msra.mxu0 0.0
  %2450 = vmatprep.subr.mxu0 0.0
  %2451 = vmatpush2.msra.mxu0 0.0
  %2452 = vmatprep.subr.mxu0 0.0
  %2453 = vmatpush2.msra.mxu0 0.0
  %2454 = vmatprep.mubr.f32.mxu0 0.0
  %2455 = vmatmul.mubr.f32.gmra.mxu0 %v2388
  %v2456 = vpop.f32.mrf.mxu0
  %v2457 = vadd.f32 %v2383, %v2456
  %v2458 = vpop.f32.mrf.mxu0
  %2459 = vdwg.mxu0
  %vm2460 = vcmask 31744
  %2461 = vst.msk [vmem:[%s9] sm:$0xff] %vm2460, %v2457
  // Predicated region
  $region38: #{lstm_model_forward.1} parent=0 // pred_check
    _
  $region39: #{lstm_model_forward.1} parent=0 // pred_check_branch
    %2463 = sbr.rel (0) target = $region41
  $region40: #{lstm_model_forward.1} parent=0 // pred_region
    _
  $region41: #{lstm_model_forward.1} parent=0 // pred_fallthru
    _
  // Predicated region
  $region42: #{lstm_model_forward.1} parent=0 // pred_check
    _
  $region43: #{lstm_model_forward.1} parent=0 // pred_check_branch
    %2465 = sbr.rel (0) target = $region45
  $region44: #{lstm_model_forward.1} parent=0 // pred_region
    _
  $region45: #{lstm_model_forward.1} parent=0 // pred_fallthru
    _

</llo_original>
